<compile_context>
chip_gen: v5e
topology: v5e:2x2
jax: 0.10.0
libtpu: 0.0.40
codegen_flags: <defaults>
</compile_context>

<pallas_src>
import jax
import jax.numpy as jnp
from jax.experimental import pallas as pl
from jax.experimental.pallas import tpu as pltpu

IN = 28 * 28        # 784
H = 256
LATENT = 32
OUT = 10
LAT_PAD = 128       # latent padded to a full lane group
OUT_PAD = 128       # logits padded to a full lane group
TB = 128            # batch tile (rows per grid step)
BN_EPS = 1e-5


def mnist_fc_kernel(x_ref,
                    w1_ref, b1_ref, s1_ref, t1_ref,
                    w2_ref, b2_ref, s2_ref, t2_ref,
                    w3_ref, b3_ref, s3_ref, t3_ref,
                    w4_ref, b4_ref,
                    logits_ref, out2_ref):
    x = x_ref[...]                                                   # (TB, 784) f32

    # relu(bn1(fc1(x)))
    h1 = jnp.dot(x.astype(jnp.bfloat16), w1_ref[...],
                 preferred_element_type=jnp.float32) + b1_ref[...]
    h1 = jnp.maximum(h1 * s1_ref[...] + t1_ref[...], 0.0)

    # out2 = relu(bn2(fc2(h1)))  -- padded to 128 lanes (lanes >= 32 are zero)
    h2 = jnp.dot(h1.astype(jnp.bfloat16), w2_ref[...],
                 preferred_element_type=jnp.float32) + b2_ref[...]
    out2 = jnp.maximum(h2 * s2_ref[...] + t2_ref[...], 0.0)

    # relu(bn3(fc3(out2)))
    h3 = jnp.dot(out2.astype(jnp.bfloat16), w3_ref[...],
                 preferred_element_type=jnp.float32) + b3_ref[...]
    h3 = jnp.maximum(h3 * s3_ref[...] + t3_ref[...], 0.0)

    # logits = fc4(h3) -- padded to 128 lanes (lanes >= 10 are zero)
    logits = jnp.dot(h3.astype(jnp.bfloat16), w4_ref[...],
                     preferred_element_type=jnp.float32) + b4_ref[...]

    logits_ref[...] = logits
    out2_ref[...] = out2


def mnist_fc_forward(x, p, tb=TB):
    """x: (B, 1, 28, 28) f32. Returns (logits (B, 10), out2 (B, 32))."""
    B = x.shape[0]
    xf = x.reshape(B, IN).astype(jnp.float32)
    B_pad = ((B + tb - 1) // tb) * tb
    if B_pad != B:
        xf = jnp.pad(xf, ((0, B_pad - B), (0, 0)))

    inputs = (xf,
              p["w1"], p["b1"], p["s1"], p["t1"],
              p["w2"], p["b2"], p["s2"], p["t2"],
              p["w3"], p["b3"], p["s3"], p["t3"],
              p["w4"], p["b4"])

    def resident(a):
        nd = a.ndim
        return pl.BlockSpec(a.shape, lambda b, _nd=nd: (0,) * _nd)   # VMEM-resident

    in_specs = [pl.BlockSpec((tb, IN), lambda b: (b, 0))] + \
               [resident(a) for a in inputs[1:]]

    logits_pad, out2_pad = pl.pallas_call(
        mnist_fc_kernel,
        out_shape=(jax.ShapeDtypeStruct((B_pad, OUT_PAD), jnp.float32),
                   jax.ShapeDtypeStruct((B_pad, LAT_PAD), jnp.float32)),
        grid=(B_pad // tb,),
        in_specs=in_specs,
        out_specs=[pl.BlockSpec((tb, OUT_PAD), lambda b: (b, 0)),
                   pl.BlockSpec((tb, LAT_PAD), lambda b: (b, 0))],
        compiler_params=pltpu.CompilerParams(
            dimension_semantics=("parallel",),
            vmem_limit_bytes=32 << 20),
    )(*inputs)

    return logits_pad[:B, :OUT], out2_pad[:B, :LATENT]


# ----------------------------- parameter setup ------------------------------

def init_raw_params(key):
    """PyTorch-style init: Linear U(±1/sqrt(fan_in)); BN with non-trivial running stats."""
    def linear(k, fi, fo):
        kw, kb = jax.random.split(k)
        bound = 1.0 / jnp.sqrt(fi)
        w = jax.random.uniform(kw, (fi, fo), jnp.float32, -bound, bound)
        b = jax.random.uniform(kb, (fo,), jnp.float32, -bound, bound)
        return w, b

    def bn(k, n):
        kg, kb, km, kv = jax.random.split(k, 4)
        gamma = jax.random.uniform(kg, (n,), jnp.float32, 0.5, 1.5)
        beta = 0.1 * jax.random.normal(kb, (n,), jnp.float32)
        mean = 0.5 * jax.random.normal(km, (n,), jnp.float32)
        var = jax.random.uniform(kv, (n,), jnp.float32, 0.5, 1.5)
        return gamma, beta, mean, var

    ks = jax.random.split(key, 7)
    p = {}
    p["w1"], p["b1"] = linear(ks[0], IN, H)
    p["bn1"] = bn(ks[1], H)
    p["w2"], p["b2"] = linear(ks[2], H, LATENT)
    p["bn2"] = bn(ks[3], LATENT)
    p["w3"], p["b3"] = linear(ks[4], LATENT, H)
    p["bn3"] = bn(ks[5], H)
    p["w4"], p["b4"] = linear(ks[6], H, OUT)
    return p


def prepare_kernel_params(raw):
    """bf16 weights, f32 biases, BN folded to (scale, shift), lane-padded where needed."""
    def fold(bn_params):
        gamma, beta, mean, var = bn_params
        scale = gamma / jnp.sqrt(var + BN_EPS)
        shift = beta - mean * scale
        return scale, shift

    s1, t1 = fold(raw["bn1"])
    s2, t2 = fold(raw["bn2"])
    s3, t3 = fold(raw["bn3"])

    def pad_cols(a, n):
        return jnp.pad(a, [(0, 0)] * (a.ndim - 1) + [(0, n - a.shape[-1])])

    def pad_rows(a, n):
        return jnp.pad(a, [(0, n - a.shape[0])] + [(0, 0)] * (a.ndim - 1))

    return {
        "w1": raw["w1"].astype(jnp.bfloat16),                              # (784, 256)
        "b1": raw["b1"].reshape(1, H),
        "s1": s1.reshape(1, H),
        "t1": t1.reshape(1, H),
        "w2": pad_cols(raw["w2"], LAT_PAD).astype(jnp.bfloat16),           # (256, 128)
        "b2": pad_cols(raw["b2"].reshape(1, LATENT), LAT_PAD),
        "s2": pad_cols(s2.reshape(1, LATENT), LAT_PAD),
        "t2": pad_cols(t2.reshape(1, LATENT), LAT_PAD),
        "w3": pad_rows(raw["w3"], LAT_PAD).astype(jnp.bfloat16),           # (128, 256)
        "b3": raw["b3"].reshape(1, H),
        "s3": s3.reshape(1, H),
        "t3": t3.reshape(1, H),
        "w4": pad_cols(raw["w4"], OUT_PAD).astype(jnp.bfloat16),           # (256, 128)
        "b4": pad_cols(raw["b4"].reshape(1, OUT), OUT_PAD),
    }


def reference_forward(x, raw):
    """Plain-JAX reference using the same bf16-weight / f32-accumulate math."""
    B = x.shape[0]
    h = x.reshape(B, IN).astype(jnp.float32)

    def dot_bf16(a, w):
        return jnp.dot(a.astype(jnp.bfloat16), w.astype(jnp.bfloat16),
                       preferred_element_type=jnp.float32)

    def bn(y, bn_params):
        gamma, beta, mean, var = bn_params
        return (y - mean) / jnp.sqrt(var + BN_EPS) * gamma + beta

    h1 = jnp.maximum(bn(dot_bf16(h, raw["w1"]) + raw["b1"], raw["bn1"]), 0.0)
    out2 = jnp.maximum(bn(dot_bf16(h1, raw["w2"]) + raw["b2"], raw["bn2"]), 0.0)
    h3 = jnp.maximum(bn(dot_bf16(out2, raw["w3"]) + raw["b3"], raw["bn3"]), 0.0)
    logits = dot_bf16(h3, raw["w4"]) + raw["b4"]
    return logits, out2


if __name__ == "__main__":
    key = jax.random.PRNGKey(0)
    k_x, k_p = jax.random.split(key)

    # B=200 exercises both batch tiling (pads to 2 tiles of 128) and the
    # ragged-batch slice; weights stay VMEM-resident across the tiles.
    B = 200
    x = jax.random.uniform(k_x, (B, 1, 28, 28), jnp.float32)

    raw = init_raw_params(k_p)
    kparams = prepare_kernel_params(raw)

    logits, out2 = mnist_fc_forward(x, kparams)
    jax.block_until_ready((logits, out2))

    ref_logits, ref_out2 = reference_forward(x, raw)

    assert logits.shape == (B, OUT) and out2.shape == (B, LATENT)
    assert jnp.allclose(logits, ref_logits, atol=1e-2, rtol=1e-2)
    assert jnp.allclose(out2, ref_out2, atol=1e-2, rtol=1e-2)

    print("KERNEL_OK")
</pallas_src>

<mosaic_0001>
module attributes {stable_mosaic.version = 11 : i64} {
  func.func @mnist_fc_kernel(%arg0: i32, %arg1: memref<128x784xf32, #tpu.memory_space<vmem>>, %arg2: memref<784x256xbf16, #tpu.memory_space<vmem>>, %arg3: memref<1x256xf32, #tpu.memory_space<vmem>>, %arg4: memref<1x256xf32, #tpu.memory_space<vmem>>, %arg5: memref<1x256xf32, #tpu.memory_space<vmem>>, %arg6: memref<256x128xbf16, #tpu.memory_space<vmem>>, %arg7: memref<1x128xf32, #tpu.memory_space<vmem>>, %arg8: memref<1x128xf32, #tpu.memory_space<vmem>>, %arg9: memref<1x128xf32, #tpu.memory_space<vmem>>, %arg10: memref<128x256xbf16, #tpu.memory_space<vmem>>, %arg11: memref<1x256xf32, #tpu.memory_space<vmem>>, %arg12: memref<1x256xf32, #tpu.memory_space<vmem>>, %arg13: memref<1x256xf32, #tpu.memory_space<vmem>>, %arg14: memref<256x128xbf16, #tpu.memory_space<vmem>>, %arg15: memref<1x128xf32, #tpu.memory_space<vmem>>, %arg16: memref<128x128xf32, #tpu.memory_space<vmem>>, %arg17: memref<128x128xf32, #tpu.memory_space<vmem>>) attributes {dimension_semantics = [#tpu.dimension_semantics<parallel>], iteration_bounds = array<i64: 2>, scalar_prefetch = 0 : i64, scratch_operands = 0 : i64, tpu.core_type = #tpu.core_type<tc>, window_params = [{transform_indices = @transform_0, window_bounds = array<i64: 128, 784>}, {pipeline_mode = #tpu.pipeline_mode<synchronous>, transform_indices = @transform_1, window_bounds = array<i64: 784, 256>}, {pipeline_mode = #tpu.pipeline_mode<synchronous>, transform_indices = @transform_2, window_bounds = array<i64: 1, 256>}, {pipeline_mode = #tpu.pipeline_mode<synchronous>, transform_indices = @transform_3, window_bounds = array<i64: 1, 256>}, {pipeline_mode = #tpu.pipeline_mode<synchronous>, transform_indices = @transform_4, window_bounds = array<i64: 1, 256>}, {pipeline_mode = #tpu.pipeline_mode<synchronous>, transform_indices = @transform_5, window_bounds = array<i64: 256, 128>}, {pipeline_mode = #tpu.pipeline_mode<synchronous>, transform_indices = @transform_6, window_bounds = array<i64: 1, 128>}, {pipeline_mode = #tpu.pipeline_mode<synchronous>, transform_indices = @transform_7, window_bounds = array<i64: 1, 128>}, {pipeline_mode = #tpu.pipeline_mode<synchronous>, transform_indices = @transform_8, window_bounds = array<i64: 1, 128>}, {pipeline_mode = #tpu.pipeline_mode<synchronous>, transform_indices = @transform_9, window_bounds = array<i64: 128, 256>}, {pipeline_mode = #tpu.pipeline_mode<synchronous>, transform_indices = @transform_10, window_bounds = array<i64: 1, 256>}, {pipeline_mode = #tpu.pipeline_mode<synchronous>, transform_indices = @transform_11, window_bounds = array<i64: 1, 256>}, {pipeline_mode = #tpu.pipeline_mode<synchronous>, transform_indices = @transform_12, window_bounds = array<i64: 1, 256>}, {pipeline_mode = #tpu.pipeline_mode<synchronous>, transform_indices = @transform_13, window_bounds = array<i64: 256, 128>}, {pipeline_mode = #tpu.pipeline_mode<synchronous>, transform_indices = @transform_14, window_bounds = array<i64: 1, 128>}, {transform_indices = @transform_15, window_bounds = array<i64: 128, 128>}, {transform_indices = @transform_16, window_bounds = array<i64: 128, 128>}]} {
    %c0 = arith.constant 0 : index
    %c0_0 = arith.constant 0 : index
    %0 = vector.load %arg1[%c0, %c0_0] : memref<128x784xf32, #tpu.memory_space<vmem>>, vector<128x784xf32>
    %1 = arith.truncf %0 : vector<128x784xf32> to vector<128x784xbf16>
    %c0_1 = arith.constant 0 : index
    %c0_2 = arith.constant 0 : index
    %2 = vector.load %arg2[%c0_1, %c0_2] : memref<784x256xbf16, #tpu.memory_space<vmem>>, vector<784x256xbf16>
    %cst = arith.constant dense<0.000000e+00> : vector<128x256xf32>
    %3 = tpu.matmul %1, %2, %cst {dimension_numbers = #tpu.dot_dimension_numbers<[1], [0], [0], [1], [0, 0, 1, 1], [], []>} : vector<128x784xbf16>, vector<784x256xbf16>, vector<128x256xf32> -> vector<128x256xf32>
    %c0_3 = arith.constant 0 : index
    %c0_4 = arith.constant 0 : index
    %4 = vector.load %arg3[%c0_3, %c0_4] : memref<1x256xf32, #tpu.memory_space<vmem>>, vector<1x256xf32>
    %5 = vector.broadcast %4 : vector<1x256xf32> to vector<128x256xf32>
    %6 = arith.addf %3, %5 : vector<128x256xf32>
    %c0_5 = arith.constant 0 : index
    %c0_6 = arith.constant 0 : index
    %7 = vector.load %arg4[%c0_5, %c0_6] : memref<1x256xf32, #tpu.memory_space<vmem>>, vector<1x256xf32>
    %8 = vector.broadcast %7 : vector<1x256xf32> to vector<128x256xf32>
    %9 = arith.mulf %6, %8 : vector<128x256xf32>
    %c0_7 = arith.constant 0 : index
    %c0_8 = arith.constant 0 : index
    %10 = vector.load %arg5[%c0_7, %c0_8] : memref<1x256xf32, #tpu.memory_space<vmem>>, vector<1x256xf32>
    %11 = vector.broadcast %10 : vector<1x256xf32> to vector<128x256xf32>
    %12 = arith.addf %9, %11 : vector<128x256xf32>
    %cst_9 = arith.constant 0.000000e+00 : f32
    %13 = vector.broadcast %cst_9 : f32 to vector<128x256xf32>
    %14 = arith.maximumf %12, %13 : vector<128x256xf32>
    %15 = arith.truncf %14 : vector<128x256xf32> to vector<128x256xbf16>
    %c0_10 = arith.constant 0 : index
    %c0_11 = arith.constant 0 : index
    %16 = vector.load %arg6[%c0_10, %c0_11] : memref<256x128xbf16, #tpu.memory_space<vmem>>, vector<256x128xbf16>
    %cst_12 = arith.constant dense<0.000000e+00> : vector<128x128xf32>
    %17 = tpu.matmul %15, %16, %cst_12 {dimension_numbers = #tpu.dot_dimension_numbers<[1], [0], [0], [1], [0, 0, 1, 1], [], []>} : vector<128x256xbf16>, vector<256x128xbf16>, vector<128x128xf32> -> vector<128x128xf32>
    %c0_13 = arith.constant 0 : index
    %c0_14 = arith.constant 0 : index
    %18 = vector.load %arg7[%c0_13, %c0_14] : memref<1x128xf32, #tpu.memory_space<vmem>>, vector<1x128xf32>
    %19 = vector.broadcast %18 : vector<1x128xf32> to vector<128x128xf32>
    %20 = arith.addf %17, %19 : vector<128x128xf32>
    %c0_15 = arith.constant 0 : index
    %c0_16 = arith.constant 0 : index
    %21 = vector.load %arg8[%c0_15, %c0_16] : memref<1x128xf32, #tpu.memory_space<vmem>>, vector<1x128xf32>
    %22 = vector.broadcast %21 : vector<1x128xf32> to vector<128x128xf32>
    %23 = arith.mulf %20, %22 : vector<128x128xf32>
    %c0_17 = arith.constant 0 : index
    %c0_18 = arith.constant 0 : index
    %24 = vector.load %arg9[%c0_17, %c0_18] : memref<1x128xf32, #tpu.memory_space<vmem>>, vector<1x128xf32>
    %25 = vector.broadcast %24 : vector<1x128xf32> to vector<128x128xf32>
    %26 = arith.addf %23, %25 : vector<128x128xf32>
    %cst_19 = arith.constant 0.000000e+00 : f32
    %27 = vector.broadcast %cst_19 : f32 to vector<128x128xf32>
    %28 = arith.maximumf %26, %27 : vector<128x128xf32>
    %29 = arith.truncf %28 : vector<128x128xf32> to vector<128x128xbf16>
    %c0_20 = arith.constant 0 : index
    %c0_21 = arith.constant 0 : index
    %30 = vector.load %arg10[%c0_20, %c0_21] : memref<128x256xbf16, #tpu.memory_space<vmem>>, vector<128x256xbf16>
    %cst_22 = arith.constant dense<0.000000e+00> : vector<128x256xf32>
    %31 = tpu.matmul %29, %30, %cst_22 {dimension_numbers = #tpu.dot_dimension_numbers<[1], [0], [0], [1], [0, 0, 1, 1], [], []>} : vector<128x128xbf16>, vector<128x256xbf16>, vector<128x256xf32> -> vector<128x256xf32>
    %c0_23 = arith.constant 0 : index
    %c0_24 = arith.constant 0 : index
    %32 = vector.load %arg11[%c0_23, %c0_24] : memref<1x256xf32, #tpu.memory_space<vmem>>, vector<1x256xf32>
    %33 = vector.broadcast %32 : vector<1x256xf32> to vector<128x256xf32>
    %34 = arith.addf %31, %33 : vector<128x256xf32>
    %c0_25 = arith.constant 0 : index
    %c0_26 = arith.constant 0 : index
    %35 = vector.load %arg12[%c0_25, %c0_26] : memref<1x256xf32, #tpu.memory_space<vmem>>, vector<1x256xf32>
    %36 = vector.broadcast %35 : vector<1x256xf32> to vector<128x256xf32>
    %37 = arith.mulf %34, %36 : vector<128x256xf32>
    %c0_27 = arith.constant 0 : index
    %c0_28 = arith.constant 0 : index
    %38 = vector.load %arg13[%c0_27, %c0_28] : memref<1x256xf32, #tpu.memory_space<vmem>>, vector<1x256xf32>
    %39 = vector.broadcast %38 : vector<1x256xf32> to vector<128x256xf32>
    %40 = arith.addf %37, %39 : vector<128x256xf32>
    %cst_29 = arith.constant 0.000000e+00 : f32
    %41 = vector.broadcast %cst_29 : f32 to vector<128x256xf32>
    %42 = arith.maximumf %40, %41 : vector<128x256xf32>
    %43 = arith.truncf %42 : vector<128x256xf32> to vector<128x256xbf16>
    %c0_30 = arith.constant 0 : index
    %c0_31 = arith.constant 0 : index
    %44 = vector.load %arg14[%c0_30, %c0_31] : memref<256x128xbf16, #tpu.memory_space<vmem>>, vector<256x128xbf16>
    %cst_32 = arith.constant dense<0.000000e+00> : vector<128x128xf32>
    %45 = tpu.matmul %43, %44, %cst_32 {dimension_numbers = #tpu.dot_dimension_numbers<[1], [0], [0], [1], [0, 0, 1, 1], [], []>} : vector<128x256xbf16>, vector<256x128xbf16>, vector<128x128xf32> -> vector<128x128xf32>
    %c0_33 = arith.constant 0 : index
    %c0_34 = arith.constant 0 : index
    %46 = vector.load %arg15[%c0_33, %c0_34] : memref<1x128xf32, #tpu.memory_space<vmem>>, vector<1x128xf32>
    %47 = vector.broadcast %46 : vector<1x128xf32> to vector<128x128xf32>
    %48 = arith.addf %45, %47 : vector<128x128xf32>
    %c0_35 = arith.constant 0 : index
    %c0_36 = arith.constant 0 : index
    %49 = vector.load %arg16[%c0_35, %c0_36] : memref<128x128xf32, #tpu.memory_space<vmem>>, vector<128x128xf32>
    tpu.vector_store %arg16[%c0_35, %c0_36], %48 {strides = array<i32>} : memref<128x128xf32, #tpu.memory_space<vmem>>, vector<128x128xf32>,
    %c0_37 = arith.constant 0 : index
    %c0_38 = arith.constant 0 : index
    %50 = vector.load %arg17[%c0_37, %c0_38] : memref<128x128xf32, #tpu.memory_space<vmem>>, vector<128x128xf32>
    tpu.vector_store %arg17[%c0_37, %c0_38], %28 {strides = array<i32>} : memref<128x128xf32, #tpu.memory_space<vmem>>, vector<128x128xf32>,
    return
  }
  func.func @transform_0(%arg0: i32) -> (i32, i32) {
    %c0_i32 = arith.constant 0 : i32
    %c0_i32_0 = arith.constant 0 : i32
    return %arg0, %c0_i32 : i32, i32
  }
  func.func @transform_1(%arg0: i32) -> (i32, i32) {
    %c0_i32 = arith.constant 0 : i32
    %c0_i32_0 = arith.constant 0 : i32
    %c0_i32_1 = arith.constant 0 : i32
    return %c0_i32, %c0_i32_0 : i32, i32
  }
  func.func @transform_2(%arg0: i32) -> (i32, i32) {
    %c0_i32 = arith.constant 0 : i32
    %c0_i32_0 = arith.constant 0 : i32
    %c0_i32_1 = arith.constant 0 : i32
    return %c0_i32, %c0_i32_0 : i32, i32
  }
  func.func @transform_3(%arg0: i32) -> (i32, i32) {
    %c0_i32 = arith.constant 0 : i32
    %c0_i32_0 = arith.constant 0 : i32
    %c0_i32_1 = arith.constant 0 : i32
    return %c0_i32, %c0_i32_0 : i32, i32
  }
  func.func @transform_4(%arg0: i32) -> (i32, i32) {
    %c0_i32 = arith.constant 0 : i32
    %c0_i32_0 = arith.constant 0 : i32
    %c0_i32_1 = arith.constant 0 : i32
    return %c0_i32, %c0_i32_0 : i32, i32
  }
  func.func @transform_5(%arg0: i32) -> (i32, i32) {
    %c0_i32 = arith.constant 0 : i32
    %c0_i32_0 = arith.constant 0 : i32
    %c0_i32_1 = arith.constant 0 : i32
    return %c0_i32, %c0_i32_0 : i32, i32
  }
  func.func @transform_6(%arg0: i32) -> (i32, i32) {
    %c0_i32 = arith.constant 0 : i32
    %c0_i32_0 = arith.constant 0 : i32
    %c0_i32_1 = arith.constant 0 : i32
    return %c0_i32, %c0_i32_0 : i32, i32
  }
  func.func @transform_7(%arg0: i32) -> (i32, i32) {
    %c0_i32 = arith.constant 0 : i32
    %c0_i32_0 = arith.constant 0 : i32
    %c0_i32_1 = arith.constant 0 : i32
    return %c0_i32, %c0_i32_0 : i32, i32
  }
  func.func @transform_8(%arg0: i32) -> (i32, i32) {
    %c0_i32 = arith.constant 0 : i32
    %c0_i32_0 = arith.constant 0 : i32
    %c0_i32_1 = arith.constant 0 : i32
    return %c0_i32, %c0_i32_0 : i32, i32
  }
  func.func @transform_9(%arg0: i32) -> (i32, i32) {
    %c0_i32 = arith.constant 0 : i32
    %c0_i32_0 = arith.constant 0 : i32
    %c0_i32_1 = arith.constant 0 : i32
    return %c0_i32, %c0_i32_0 : i32, i32
  }
  func.func @transform_10(%arg0: i32) -> (i32, i32) {
    %c0_i32 = arith.constant 0 : i32
    %c0_i32_0 = arith.constant 0 : i32
    %c0_i32_1 = arith.constant 0 : i32
    return %c0_i32, %c0_i32_0 : i32, i32
  }
  func.func @transform_11(%arg0: i32) -> (i32, i32) {
    %c0_i32 = arith.constant 0 : i32
    %c0_i32_0 = arith.constant 0 : i32
    %c0_i32_1 = arith.constant 0 : i32
    return %c0_i32, %c0_i32_0 : i32, i32
  }
  func.func @transform_12(%arg0: i32) -> (i32, i32) {
    %c0_i32 = arith.constant 0 : i32
    %c0_i32_0 = arith.constant 0 : i32
    %c0_i32_1 = arith.constant 0 : i32
    return %c0_i32, %c0_i32_0 : i32, i32
  }
  func.func @transform_13(%arg0: i32) -> (i32, i32) {
    %c0_i32 = arith.constant 0 : i32
    %c0_i32_0 = arith.constant 0 : i32
    %c0_i32_1 = arith.constant 0 : i32
    return %c0_i32, %c0_i32_0 : i32, i32
  }
  func.func @transform_14(%arg0: i32) -> (i32, i32) {
    %c0_i32 = arith.constant 0 : i32
    %c0_i32_0 = arith.constant 0 : i32
    %c0_i32_1 = arith.constant 0 : i32
    return %c0_i32, %c0_i32_0 : i32, i32
  }
  func.func @transform_15(%arg0: i32) -> (i32, i32) {
    %c0_i32 = arith.constant 0 : i32
    %c0_i32_0 = arith.constant 0 : i32
    return %arg0, %c0_i32 : i32, i32
  }
  func.func @transform_16(%arg0: i32) -> (i32, i32) {
    %c0_i32 = arith.constant 0 : i32
    %c0_i32_0 = arith.constant 0 : i32
    return %arg0, %c0_i32 : i32, i32
  }
}

</mosaic_0001>

<llo_original>
// kernel: tpu_custom_call.1
$region0: #{tpu_custom_call.1}
  #allocation0 [shape = 'u32[]', space=smem, size = 0x4, offset = 0x4, fixed_abs, tag = 'smem constant byte address 0x4 - core index']
  #allocation1 [shape = 'u32[72,128]{1,0:T(1,128)}', space=vmem, size = 0x9000, scoped, tag = 'internal scratch']
  %s0 = inlined_call_operand.vmem [shape: f32[256,784], index: 0, kind: input, shape index: {}]
  %s1 = inlined_call_operand.vmem [shape: bf16[784,256], index: 1, kind: input, shape index: {}]
  %s2 = inlined_call_operand.vmem [shape: f32[1,256], index: 2, kind: input, shape index: {}]
  %s3 = inlined_call_operand.vmem [shape: f32[1,256], index: 3, kind: input, shape index: {}]
  %s4 = inlined_call_operand.vmem [shape: f32[1,256], index: 4, kind: input, shape index: {}]
  %s5 = inlined_call_operand.vmem [shape: bf16[256,128], index: 5, kind: input, shape index: {}]
  %s6 = inlined_call_operand.vmem [shape: f32[1,128], index: 6, kind: input, shape index: {}]
  %s7 = inlined_call_operand.vmem [shape: f32[1,128], index: 7, kind: input, shape index: {}]
  %s8 = inlined_call_operand.vmem [shape: f32[1,128], index: 8, kind: input, shape index: {}]
  %s9 = inlined_call_operand.vmem [shape: bf16[128,256], index: 9, kind: input, shape index: {}]
  %s10 = inlined_call_operand.vmem [shape: f32[1,256], index: 10, kind: input, shape index: {}]
  %s11 = inlined_call_operand.vmem [shape: f32[1,256], index: 11, kind: input, shape index: {}]
  %s12 = inlined_call_operand.vmem [shape: f32[1,256], index: 12, kind: input, shape index: {}]
  %s13 = inlined_call_operand.vmem [shape: bf16[256,128], index: 13, kind: input, shape index: {}]
  %s14 = inlined_call_operand.vmem [shape: f32[1,128], index: 14, kind: input, shape index: {}]
  %s15 = inlined_call_operand.hbm [shape: f32[256,128], index: 15, kind: output, shape index: {0}]
  %s16 = inlined_call_operand.hbm [shape: f32[256,128], index: 16, kind: output, shape index: {1}]
  %17 = xla_tuple %s15, %s16
  %s18 = sld [smem:[#allocation0]]
  $region101: #{tpu_custom_call.1} parent=0
    _
  %s20 = ssub.s32 1, %s18
  %s21 = scalar_select 0, %s20, %s18
  $region1: #{tpu_custom_call.1} parent=0
    #allocation2 [shape = 'u8[131072]{0}', space=vmem, size = 0x20000, scoped, tag = 'output window, operand 0']
    #allocation3 [shape = 's32[2]{0}', space=sflag, size = 0x8, scoped, tag = 'scoped memory for tpu_custom_call.1']
    #allocation4 [shape = 'u8[131072]{0}', space=vmem, size = 0x20000, scoped, tag = 'output window, operand 1']
    #allocation5 [shape = 's32[2]{0}', space=sflag, size = 0x8, scoped, tag = 'scoped memory for tpu_custom_call.1']
    %22 = vsyncpa [#allocation3], 0
    %s23 = scalar_lea.sflag [#allocation3], 1
    %24 = vsyncpa %s23, 0
    %25 = vsyncpa [#allocation5], 0
    %s26 = scalar_lea.sflag [#allocation5], 1
    %27 = vsyncpa %s26, 0
    loop: start=0, step=1, limit=4
    $region2: #{tpu_custom_call.1} parent=1 // loop_pre_header
      _
    $region3: #{tpu_custom_call.1} parent=1 // loop_header
      %s29 = sphi 0, %s33
      %p30 = scmp.ge.s32.totalorder %s29, 4
      %s39 = sphi 0, %s41
      %s42 = sphi 0, %s39
      %s43 = sphi 0, %s42
      %s59 = sphi 0, %s43
      %s63 = sphi 0, %s63
      %s65 = sphi 0, %s63
      %s66 = sphi 0, %s65
      %s80 = sphi 0, %s66
      %s84 = sphi 0, %s84
      %s86 = sphi 0, %s84
      %s87 = sphi 0, %s86
      %s101 = sphi 0, %s87
      %s105 = sphi 0, %s105
      %s107 = sphi 0, %s105
      %s108 = sphi 0, %s107
      %s122 = sphi 0, %s108
      %s126 = sphi 0, %s126
      %s128 = sphi 0, %s126
      %s129 = sphi 0, %s128
      %s143 = sphi 0, %s129
      %s147 = sphi 0, %s147
      %s149 = sphi 0, %s147
      %s150 = sphi 0, %s149
      %s164 = sphi 0, %s150
      %s168 = sphi 0, %s168
      %s170 = sphi 0, %s168
      %s171 = sphi 0, %s170
      %s185 = sphi 0, %s171
      %s189 = sphi 0, %s189
      %s191 = sphi 0, %s189
      %s192 = sphi 0, %s191
      %s206 = sphi 0, %s192
      %s210 = sphi 0, %s210
      %s212 = sphi 0, %s210
      %s213 = sphi 0, %s212
      %s227 = sphi 0, %s213
      %s231 = sphi 0, %s231
      %s233 = sphi 0, %s231
      %s234 = sphi 0, %s233
      %s248 = sphi 0, %s234
      %s252 = sphi 0, %s252
      %s254 = sphi 0, %s252
      %s255 = sphi 0, %s254
      %s269 = sphi 0, %s255
      %s273 = sphi 0, %s273
      %s275 = sphi 0, %s273
      %s276 = sphi 0, %s275
      %s290 = sphi 0, %s276
      %s294 = sphi 0, %s294
      %s296 = sphi 0, %s294
      %s297 = sphi 0, %s296
      %s311 = sphi 0, %s297
      %s315 = sphi 0, %s315
      %s317 = sphi 0, %s315
      %s318 = sphi 0, %s317
      %s332 = sphi 0, %s318
      %s336 = sphi 0, %s336
      %s338 = sphi 0, %s336
      %s339 = sphi 0, %s338
      %s353 = sphi 0, %s339
      %s359 = sphi 0, %s361
      %s362 = sphi 0, %s359
      %s363 = sphi 0, %s362
      %s379 = sphi 0, %s363
      %s385 = sphi 0, %s387
      %s388 = sphi 0, %s385
      %s389 = sphi 0, %s388
      %s405 = sphi 0, %s389
    $region4: #{tpu_custom_call.1} parent=1 // loop_header_branch
      %32 = sbr.rel (%p30) target = $region8
    $region5: #{tpu_custom_call.1} parent=1 // loop_body
      %s34 = ssub.s32 %s29, 1
      %s35 = ssub.s32 %s29, 2
      %s36 = sadd.s32 %s29, 1
      %s37 = ssub.s32 %s29, %s36
      %p38 = scmp.eq.s32.totalorder %s37, 0
      %s40 = sadd.s32 %s39, 1
      %s41 = scalar_select %p38, %s39, %s40
      %p44 = pneg %p38
      %p45 = scmp.eq.s32.totalorder %s29, 1
      %p46 = por %p44, %p45
      %p47 = scmp.ne.s32.totalorder %s39, %s42
      %p48 = scmp.eq.s32.totalorder %s29, 0
      %p49 = por %p47, %p48
      %p50 = scmp.ne.s32.totalorder %s39, %s42
      %p51 = scmp.eq.s32.totalorder %s34, 1
      %p52 = por %p50, %p51
      %p53 = scmp.ne.s32.totalorder %s42, %s43
      %p54 = scmp.eq.s32.totalorder %s34, 0
      %p55 = por %p53, %p54
      %p56 = scmp.ne.s32.totalorder %s42, %s43
      %p57 = scmp.eq.s32.totalorder %s35, 1
      %p58 = por %p56, %p57
      %p60 = scmp.ne.s32.totalorder %s43, %s59
      %p61 = scmp.eq.s32.totalorder %s35, 0
      %p62 = por %p60, %p61
      %s64 = sadd.s32 %s63, 1
      %p67 = scmp.eq.s32.totalorder %s29, 1
      %p68 = scmp.ne.s32.totalorder %s63, %s65
      %p69 = scmp.eq.s32.totalorder %s29, 0
      %p70 = por %p68, %p69
      %p71 = scmp.ne.s32.totalorder %s63, %s65
      %p72 = scmp.eq.s32.totalorder %s34, 1
      %p73 = por %p71, %p72
      %p74 = scmp.ne.s32.totalorder %s65, %s66
      %p75 = scmp.eq.s32.totalorder %s34, 0
      %p76 = por %p74, %p75
      %p77 = scmp.ne.s32.totalorder %s65, %s66
      %p78 = scmp.eq.s32.totalorder %s35, 1
      %p79 = por %p77, %p78
      %p81 = scmp.ne.s32.totalorder %s66, %s80
      %p82 = scmp.eq.s32.totalorder %s35, 0
      %p83 = por %p81, %p82
      %s85 = sadd.s32 %s84, 1
      %p88 = scmp.eq.s32.totalorder %s29, 1
      %p89 = scmp.ne.s32.totalorder %s84, %s86
      %p90 = scmp.eq.s32.totalorder %s29, 0
      %p91 = por %p89, %p90
      %p92 = scmp.ne.s32.totalorder %s84, %s86
      %p93 = scmp.eq.s32.totalorder %s34, 1
      %p94 = por %p92, %p93
      %p95 = scmp.ne.s32.totalorder %s86, %s87
      %p96 = scmp.eq.s32.totalorder %s34, 0
      %p97 = por %p95, %p96
      %p98 = scmp.ne.s32.totalorder %s86, %s87
      %p99 = scmp.eq.s32.totalorder %s35, 1
      %p100 = por %p98, %p99
      %p102 = scmp.ne.s32.totalorder %s87, %s101
      %p103 = scmp.eq.s32.totalorder %s35, 0
      %p104 = por %p102, %p103
      %s106 = sadd.s32 %s105, 1
      %p109 = scmp.eq.s32.totalorder %s29, 1
      %p110 = scmp.ne.s32.totalorder %s105, %s107
      %p111 = scmp.eq.s32.totalorder %s29, 0
      %p112 = por %p110, %p111
      %p113 = scmp.ne.s32.totalorder %s105, %s107
      %p114 = scmp.eq.s32.totalorder %s34, 1
      %p115 = por %p113, %p114
      %p116 = scmp.ne.s32.totalorder %s107, %s108
      %p117 = scmp.eq.s32.totalorder %s34, 0
      %p118 = por %p116, %p117
      %p119 = scmp.ne.s32.totalorder %s107, %s108
      %p120 = scmp.eq.s32.totalorder %s35, 1
      %p121 = por %p119, %p120
      %p123 = scmp.ne.s32.totalorder %s108, %s122
      %p124 = scmp.eq.s32.totalorder %s35, 0
      %p125 = por %p123, %p124
      %s127 = sadd.s32 %s126, 1
      %p130 = scmp.eq.s32.totalorder %s29, 1
      %p131 = scmp.ne.s32.totalorder %s126, %s128
      %p132 = scmp.eq.s32.totalorder %s29, 0
      %p133 = por %p131, %p132
      %p134 = scmp.ne.s32.totalorder %s126, %s128
      %p135 = scmp.eq.s32.totalorder %s34, 1
      %p136 = por %p134, %p135
      %p137 = scmp.ne.s32.totalorder %s128, %s129
      %p138 = scmp.eq.s32.totalorder %s34, 0
      %p139 = por %p137, %p138
      %p140 = scmp.ne.s32.totalorder %s128, %s129
      %p141 = scmp.eq.s32.totalorder %s35, 1
      %p142 = por %p140, %p141
      %p144 = scmp.ne.s32.totalorder %s129, %s143
      %p145 = scmp.eq.s32.totalorder %s35, 0
      %p146 = por %p144, %p145
      %s148 = sadd.s32 %s147, 1
      %p151 = scmp.eq.s32.totalorder %s29, 1
      %p152 = scmp.ne.s32.totalorder %s147, %s149
      %p153 = scmp.eq.s32.totalorder %s29, 0
      %p154 = por %p152, %p153
      %p155 = scmp.ne.s32.totalorder %s147, %s149
      %p156 = scmp.eq.s32.totalorder %s34, 1
      %p157 = por %p155, %p156
      %p158 = scmp.ne.s32.totalorder %s149, %s150
      %p159 = scmp.eq.s32.totalorder %s34, 0
      %p160 = por %p158, %p159
      %p161 = scmp.ne.s32.totalorder %s149, %s150
      %p162 = scmp.eq.s32.totalorder %s35, 1
      %p163 = por %p161, %p162
      %p165 = scmp.ne.s32.totalorder %s150, %s164
      %p166 = scmp.eq.s32.totalorder %s35, 0
      %p167 = por %p165, %p166
      %s169 = sadd.s32 %s168, 1
      %p172 = scmp.eq.s32.totalorder %s29, 1
      %p173 = scmp.ne.s32.totalorder %s168, %s170
      %p174 = scmp.eq.s32.totalorder %s29, 0
      %p175 = por %p173, %p174
      %p176 = scmp.ne.s32.totalorder %s168, %s170
      %p177 = scmp.eq.s32.totalorder %s34, 1
      %p178 = por %p176, %p177
      %p179 = scmp.ne.s32.totalorder %s170, %s171
      %p180 = scmp.eq.s32.totalorder %s34, 0
      %p181 = por %p179, %p180
      %p182 = scmp.ne.s32.totalorder %s170, %s171
      %p183 = scmp.eq.s32.totalorder %s35, 1
      %p184 = por %p182, %p183
      %p186 = scmp.ne.s32.totalorder %s171, %s185
      %p187 = scmp.eq.s32.totalorder %s35, 0
      %p188 = por %p186, %p187
      %s190 = sadd.s32 %s189, 1
      %p193 = scmp.eq.s32.totalorder %s29, 1
      %p194 = scmp.ne.s32.totalorder %s189, %s191
      %p195 = scmp.eq.s32.totalorder %s29, 0
      %p196 = por %p194, %p195
      %p197 = scmp.ne.s32.totalorder %s189, %s191
      %p198 = scmp.eq.s32.totalorder %s34, 1
      %p199 = por %p197, %p198
      %p200 = scmp.ne.s32.totalorder %s191, %s192
      %p201 = scmp.eq.s32.totalorder %s34, 0
      %p202 = por %p200, %p201
      %p203 = scmp.ne.s32.totalorder %s191, %s192
      %p204 = scmp.eq.s32.totalorder %s35, 1
      %p205 = por %p203, %p204
      %p207 = scmp.ne.s32.totalorder %s192, %s206
      %p208 = scmp.eq.s32.totalorder %s35, 0
      %p209 = por %p207, %p208
      %s211 = sadd.s32 %s210, 1
      %p214 = scmp.eq.s32.totalorder %s29, 1
      %p215 = scmp.ne.s32.totalorder %s210, %s212
      %p216 = scmp.eq.s32.totalorder %s29, 0
      %p217 = por %p215, %p216
      %p218 = scmp.ne.s32.totalorder %s210, %s212
      %p219 = scmp.eq.s32.totalorder %s34, 1
      %p220 = por %p218, %p219
      %p221 = scmp.ne.s32.totalorder %s212, %s213
      %p222 = scmp.eq.s32.totalorder %s34, 0
      %p223 = por %p221, %p222
      %p224 = scmp.ne.s32.totalorder %s212, %s213
      %p225 = scmp.eq.s32.totalorder %s35, 1
      %p226 = por %p224, %p225
      %p228 = scmp.ne.s32.totalorder %s213, %s227
      %p229 = scmp.eq.s32.totalorder %s35, 0
      %p230 = por %p228, %p229
      %s232 = sadd.s32 %s231, 1
      %p235 = scmp.eq.s32.totalorder %s29, 1
      %p236 = scmp.ne.s32.totalorder %s231, %s233
      %p237 = scmp.eq.s32.totalorder %s29, 0
      %p238 = por %p236, %p237
      %p239 = scmp.ne.s32.totalorder %s231, %s233
      %p240 = scmp.eq.s32.totalorder %s34, 1
      %p241 = por %p239, %p240
      %p242 = scmp.ne.s32.totalorder %s233, %s234
      %p243 = scmp.eq.s32.totalorder %s34, 0
      %p244 = por %p242, %p243
      %p245 = scmp.ne.s32.totalorder %s233, %s234
      %p246 = scmp.eq.s32.totalorder %s35, 1
      %p247 = por %p245, %p246
      %p249 = scmp.ne.s32.totalorder %s234, %s248
      %p250 = scmp.eq.s32.totalorder %s35, 0
      %p251 = por %p249, %p250
      %s253 = sadd.s32 %s252, 1
      %p256 = scmp.eq.s32.totalorder %s29, 1
      %p257 = scmp.ne.s32.totalorder %s252, %s254
      %p258 = scmp.eq.s32.totalorder %s29, 0
      %p259 = por %p257, %p258
      %p260 = scmp.ne.s32.totalorder %s252, %s254
      %p261 = scmp.eq.s32.totalorder %s34, 1
      %p262 = por %p260, %p261
      %p263 = scmp.ne.s32.totalorder %s254, %s255
      %p264 = scmp.eq.s32.totalorder %s34, 0
      %p265 = por %p263, %p264
      %p266 = scmp.ne.s32.totalorder %s254, %s255
      %p267 = scmp.eq.s32.totalorder %s35, 1
      %p268 = por %p266, %p267
      %p270 = scmp.ne.s32.totalorder %s255, %s269
      %p271 = scmp.eq.s32.totalorder %s35, 0
      %p272 = por %p270, %p271
      %s274 = sadd.s32 %s273, 1
      %p277 = scmp.eq.s32.totalorder %s29, 1
      %p278 = scmp.ne.s32.totalorder %s273, %s275
      %p279 = scmp.eq.s32.totalorder %s29, 0
      %p280 = por %p278, %p279
      %p281 = scmp.ne.s32.totalorder %s273, %s275
      %p282 = scmp.eq.s32.totalorder %s34, 1
      %p283 = por %p281, %p282
      %p284 = scmp.ne.s32.totalorder %s275, %s276
      %p285 = scmp.eq.s32.totalorder %s34, 0
      %p286 = por %p284, %p285
      %p287 = scmp.ne.s32.totalorder %s275, %s276
      %p288 = scmp.eq.s32.totalorder %s35, 1
      %p289 = por %p287, %p288
      %p291 = scmp.ne.s32.totalorder %s276, %s290
      %p292 = scmp.eq.s32.totalorder %s35, 0
      %p293 = por %p291, %p292
      %s295 = sadd.s32 %s294, 1
      %p298 = scmp.eq.s32.totalorder %s29, 1
      %p299 = scmp.ne.s32.totalorder %s294, %s296
      %p300 = scmp.eq.s32.totalorder %s29, 0
      %p301 = por %p299, %p300
      %p302 = scmp.ne.s32.totalorder %s294, %s296
      %p303 = scmp.eq.s32.totalorder %s34, 1
      %p304 = por %p302, %p303
      %p305 = scmp.ne.s32.totalorder %s296, %s297
      %p306 = scmp.eq.s32.totalorder %s34, 0
      %p307 = por %p305, %p306
      %p308 = scmp.ne.s32.totalorder %s296, %s297
      %p309 = scmp.eq.s32.totalorder %s35, 1
      %p310 = por %p308, %p309
      %p312 = scmp.ne.s32.totalorder %s297, %s311
      %p313 = scmp.eq.s32.totalorder %s35, 0
      %p314 = por %p312, %p313
      %s316 = sadd.s32 %s315, 1
      %p319 = scmp.eq.s32.totalorder %s29, 1
      %p320 = scmp.ne.s32.totalorder %s315, %s317
      %p321 = scmp.eq.s32.totalorder %s29, 0
      %p322 = por %p320, %p321
      %p323 = scmp.ne.s32.totalorder %s315, %s317
      %p324 = scmp.eq.s32.totalorder %s34, 1
      %p325 = por %p323, %p324
      %p326 = scmp.ne.s32.totalorder %s317, %s318
      %p327 = scmp.eq.s32.totalorder %s34, 0
      %p328 = por %p326, %p327
      %p329 = scmp.ne.s32.totalorder %s317, %s318
      %p330 = scmp.eq.s32.totalorder %s35, 1
      %p331 = por %p329, %p330
      %p333 = scmp.ne.s32.totalorder %s318, %s332
      %p334 = scmp.eq.s32.totalorder %s35, 0
      %p335 = por %p333, %p334
      %s337 = sadd.s32 %s336, 1
      %p340 = scmp.eq.s32.totalorder %s29, 1
      %p341 = scmp.ne.s32.totalorder %s336, %s338
      %p342 = scmp.eq.s32.totalorder %s29, 0
      %p343 = por %p341, %p342
      %p344 = scmp.ne.s32.totalorder %s336, %s338
      %p345 = scmp.eq.s32.totalorder %s34, 1
      %p346 = por %p344, %p345
      %p347 = scmp.ne.s32.totalorder %s338, %s339
      %p348 = scmp.eq.s32.totalorder %s34, 0
      %p349 = por %p347, %p348
      %p350 = scmp.ne.s32.totalorder %s338, %s339
      %p351 = scmp.eq.s32.totalorder %s35, 1
      %p352 = por %p350, %p351
      %p354 = scmp.ne.s32.totalorder %s339, %s353
      %p355 = scmp.eq.s32.totalorder %s35, 0
      %p356 = por %p354, %p355
      %s357 = ssub.s32 %s29, %s36
      %p358 = scmp.eq.s32.totalorder %s357, 0
      %s360 = sadd.s32 %s359, 1
      %s361 = scalar_select %p358, %s359, %s360
      %p364 = pneg %p358
      %p365 = scmp.eq.s32.totalorder %s29, 1
      %p366 = por %p364, %p365
      %p367 = scmp.ne.s32.totalorder %s359, %s362
      %p368 = scmp.eq.s32.totalorder %s29, 0
      %p369 = por %p367, %p368
      %p370 = scmp.ne.s32.totalorder %s359, %s362
      %p371 = scmp.eq.s32.totalorder %s34, 1
      %p372 = por %p370, %p371
      %p373 = scmp.ne.s32.totalorder %s362, %s363
      %p374 = scmp.eq.s32.totalorder %s34, 0
      %p375 = por %p373, %p374
      %p376 = scmp.ne.s32.totalorder %s362, %s363
      %p377 = scmp.eq.s32.totalorder %s35, 1
      %p378 = por %p376, %p377
      %p380 = scmp.ne.s32.totalorder %s363, %s379
      %p381 = scmp.eq.s32.totalorder %s35, 0
      %p382 = por %p380, %p381
      %s383 = ssub.s32 %s29, %s36
      %p384 = scmp.eq.s32.totalorder %s383, 0
      %s386 = sadd.s32 %s385, 1
      %s387 = scalar_select %p384, %s385, %s386
      %p390 = pneg %p384
      %p391 = scmp.eq.s32.totalorder %s29, 1
      %p392 = por %p390, %p391
      %p393 = scmp.ne.s32.totalorder %s385, %s388
      %p394 = scmp.eq.s32.totalorder %s29, 0
      %p395 = por %p393, %p394
      %p396 = scmp.ne.s32.totalorder %s385, %s388
      %p397 = scmp.eq.s32.totalorder %s34, 1
      %p398 = por %p396, %p397
      %p399 = scmp.ne.s32.totalorder %s388, %s389
      %p400 = scmp.eq.s32.totalorder %s34, 0
      %p401 = por %p399, %p400
      %p402 = scmp.ne.s32.totalorder %s388, %s389
      %p403 = scmp.eq.s32.totalorder %s35, 1
      %p404 = por %p402, %p403
      %p406 = scmp.ne.s32.totalorder %s389, %s405
      %p407 = scmp.eq.s32.totalorder %s35, 0
      %p408 = por %p406, %p407
      %p409 = scmp.le.s32.totalorder 1, %s29
      %p410 = scmp.lt.s32.totalorder %s29, 3
      %p411 = pnand %p409, %p410
      %p412 = pneg %p411
      // Predicated region
      $region9: #{tpu_custom_call.1} parent=5 // pred_check
        _
      $region10: #{tpu_custom_call.1} parent=5 // pred_check_branch
        %414 = sbr.rel (%p411) target = $region12
      $region11: #{tpu_custom_call.1} parent=5 // pred_region
        %s415 = ssub.s32 %s29, 1
        // Predicated region
        $region13: #{tpu_custom_call.1} parent=11 // pred_check
          %p416 = pneg %p76
        $region14: #{tpu_custom_call.1} parent=11 // pred_check_branch
          %418 = sbr.rel (%p416) target = $region16
        $region15: #{tpu_custom_call.1} parent=11 // pred_region
          _
        $region16: #{tpu_custom_call.1} parent=11 // pred_fallthru
          _
        // Predicated region
        $region17: #{tpu_custom_call.1} parent=11 // pred_check
          %p419 = pneg %p97
        $region18: #{tpu_custom_call.1} parent=11 // pred_check_branch
          %421 = sbr.rel (%p419) target = $region20
        $region19: #{tpu_custom_call.1} parent=11 // pred_region
          _
        $region20: #{tpu_custom_call.1} parent=11 // pred_fallthru
          _
        // Predicated region
        $region21: #{tpu_custom_call.1} parent=11 // pred_check
          %p422 = pneg %p118
        $region22: #{tpu_custom_call.1} parent=11 // pred_check_branch
          %424 = sbr.rel (%p422) target = $region24
        $region23: #{tpu_custom_call.1} parent=11 // pred_region
          _
        $region24: #{tpu_custom_call.1} parent=11 // pred_fallthru
          _
        // Predicated region
        $region25: #{tpu_custom_call.1} parent=11 // pred_check
          %p425 = pneg %p139
        $region26: #{tpu_custom_call.1} parent=11 // pred_check_branch
          %427 = sbr.rel (%p425) target = $region28
        $region27: #{tpu_custom_call.1} parent=11 // pred_region
          _
        $region28: #{tpu_custom_call.1} parent=11 // pred_fallthru
          _
        // Predicated region
        $region29: #{tpu_custom_call.1} parent=11 // pred_check
          %p428 = pneg %p160
        $region30: #{tpu_custom_call.1} parent=11 // pred_check_branch
          %430 = sbr.rel (%p428) target = $region32
        $region31: #{tpu_custom_call.1} parent=11 // pred_region
          _
        $region32: #{tpu_custom_call.1} parent=11 // pred_fallthru
          _
        // Predicated region
        $region33: #{tpu_custom_call.1} parent=11 // pred_check
          %p431 = pneg %p181
        $region34: #{tpu_custom_call.1} parent=11 // pred_check_branch
          %433 = sbr.rel (%p431) target = $region36
        $region35: #{tpu_custom_call.1} parent=11 // pred_region
          _
        $region36: #{tpu_custom_call.1} parent=11 // pred_fallthru
          _
        // Predicated region
        $region37: #{tpu_custom_call.1} parent=11 // pred_check
          %p434 = pneg %p202
        $region38: #{tpu_custom_call.1} parent=11 // pred_check_branch
          %436 = sbr.rel (%p434) target = $region40
        $region39: #{tpu_custom_call.1} parent=11 // pred_region
          _
        $region40: #{tpu_custom_call.1} parent=11 // pred_fallthru
          _
        // Predicated region
        $region41: #{tpu_custom_call.1} parent=11 // pred_check
          %p437 = pneg %p223
        $region42: #{tpu_custom_call.1} parent=11 // pred_check_branch
          %439 = sbr.rel (%p437) target = $region44
        $region43: #{tpu_custom_call.1} parent=11 // pred_region
          _
        $region44: #{tpu_custom_call.1} parent=11 // pred_fallthru
          _
        // Predicated region
        $region45: #{tpu_custom_call.1} parent=11 // pred_check
          %p440 = pneg %p244
        $region46: #{tpu_custom_call.1} parent=11 // pred_check_branch
          %442 = sbr.rel (%p440) target = $region48
        $region47: #{tpu_custom_call.1} parent=11 // pred_region
          _
        $region48: #{tpu_custom_call.1} parent=11 // pred_fallthru
          _
        // Predicated region
        $region49: #{tpu_custom_call.1} parent=11 // pred_check
          %p443 = pneg %p265
        $region50: #{tpu_custom_call.1} parent=11 // pred_check_branch
          %445 = sbr.rel (%p443) target = $region52
        $region51: #{tpu_custom_call.1} parent=11 // pred_region
          _
        $region52: #{tpu_custom_call.1} parent=11 // pred_fallthru
          _
        // Predicated region
        $region53: #{tpu_custom_call.1} parent=11 // pred_check
          %p446 = pneg %p286
        $region54: #{tpu_custom_call.1} parent=11 // pred_check_branch
          %448 = sbr.rel (%p446) target = $region56
        $region55: #{tpu_custom_call.1} parent=11 // pred_region
          _
        $region56: #{tpu_custom_call.1} parent=11 // pred_fallthru
          _
        // Predicated region
        $region57: #{tpu_custom_call.1} parent=11 // pred_check
          %p449 = pneg %p307
        $region58: #{tpu_custom_call.1} parent=11 // pred_check_branch
          %451 = sbr.rel (%p449) target = $region60
        $region59: #{tpu_custom_call.1} parent=11 // pred_region
          _
        $region60: #{tpu_custom_call.1} parent=11 // pred_fallthru
          _
        // Predicated region
        $region61: #{tpu_custom_call.1} parent=11 // pred_check
          %p452 = pneg %p328
        $region62: #{tpu_custom_call.1} parent=11 // pred_check_branch
          %454 = sbr.rel (%p452) target = $region64
        $region63: #{tpu_custom_call.1} parent=11 // pred_region
          _
        $region64: #{tpu_custom_call.1} parent=11 // pred_fallthru
          _
        // Predicated region
        $region65: #{tpu_custom_call.1} parent=11 // pred_check
          %p455 = pneg %p349
        $region66: #{tpu_custom_call.1} parent=11 // pred_check_branch
          %457 = sbr.rel (%p455) target = $region68
        $region67: #{tpu_custom_call.1} parent=11 // pred_region
          _
        $region68: #{tpu_custom_call.1} parent=11 // pred_fallthru
          _
      $region12: #{tpu_custom_call.1} parent=5 // pred_fallthru
        _
      %p458 = scmp.lt.s32.totalorder %s29, 2
      // Predicated region
      $region69: #{tpu_custom_call.1} parent=5 // pred_check
        %p459 = pneg %p458
      $region70: #{tpu_custom_call.1} parent=5 // pred_check_branch
        %461 = sbr.rel (%p459) target = $region72
      $region71: #{tpu_custom_call.1} parent=5 // pred_region
        // Predicated region
        $region73: #{tpu_custom_call.1} parent=71 // pred_check
          %p462 = pneg %p49
        $region74: #{tpu_custom_call.1} parent=71 // pred_check_branch
          %464 = sbr.rel (%p462) target = $region76
        $region75: #{tpu_custom_call.1} parent=71 // pred_region
          %s465 = smul.u32 16, %s29
          %p466 = scmp.lt.s32.totalorder %s465, 31
          %s467 = scalar_select %p466, %s465, 31
          %s468 = smul.addr %s467, 7
          %s469 = smul.addr %s468, 8
          %s470 = scalar_lea.vmem %s0, %s469
          %s471 = smul.u32 16, %s29
        $region76: #{tpu_custom_call.1} parent=71 // pred_fallthru
          _
      $region72: #{tpu_custom_call.1} parent=5 // pred_fallthru
        _
      %p472 = scmp.le.s32.totalorder 1, %s29
      %p473 = scmp.lt.s32.totalorder %s29, 3
      %p474 = pnand %p472, %p473
      %p475 = pneg %p474
      // Predicated region
      $region77: #{tpu_custom_call.1} parent=5 // pred_check
        _
      $region78: #{tpu_custom_call.1} parent=5 // pred_check_branch
        %477 = sbr.rel (%p474) target = $region80
      $region79: #{tpu_custom_call.1} parent=5 // pred_region
        %s478 = ssub.s32 %s29, 1
        %s479 = smul.u32 16, %s34
        %p480 = scmp.lt.s32.totalorder %s479, 31
        %s481 = scalar_select %p480, %s479, 31
        %s482 = smul.addr %s481, 7
        %s483 = smul.addr %s482, 8
        %s484 = scalar_lea.vmem %s0, %s483
        %p485 = pneg %p55
        %p486 = pneg %p52
        %p487 = pneg %p76
        %p488 = pneg %p73
        %p489 = pneg %p97
        %p490 = pneg %p94
        %p491 = pneg %p118
        %p492 = pneg %p115
        %p493 = pneg %p139
        %p494 = pneg %p136
        %p495 = pneg %p160
        %p496 = pneg %p157
        %p497 = pneg %p181
        %p498 = pneg %p178
        %p499 = pneg %p202
        %p500 = pneg %p199
        %p501 = pneg %p223
        %p502 = pneg %p220
        %p503 = pneg %p244
        %p504 = pneg %p241
        %p505 = pneg %p265
        %p506 = pneg %p262
        %p507 = pneg %p286
        %p508 = pneg %p283
        %p509 = pneg %p307
        %p510 = pneg %p304
        %p511 = pneg %p328
        %p512 = pneg %p325
        %p513 = pneg %p349
        %p514 = pneg %p346
        %p515 = pneg %p375
        %p516 = pneg %p372
        %s517 = sand.u32 %s362, 1
        %s518 = scalar_lea.sflag [#allocation3], %s517
        %s519 = sand.u32 %s362, 1
        %s520 = smul.addr %s519, 128
        %s521 = scalar_lea.vmem [#allocation2], %s520
        %p522 = pneg %p401
        %p523 = pneg %p398
        %s524 = sand.u32 %s388, 1
        %s525 = scalar_lea.sflag [#allocation5], %s524
        %s526 = sand.u32 %s388, 1
        %s527 = smul.addr %s526, 128
        %s528 = scalar_lea.vmem [#allocation4], %s527
        %s529 = smul.u32 16, %s34
        %p530 = scmp.lt.s32.totalorder %s529, 31
        %s531 = scalar_select %p530, %s529, 31
        %s532 = smul.addr %s531, 7
        %s533 = smul.addr %s532, 8
        %s534 = scalar_lea.vmem %s0, %s533
        %s535 = smul.u32 16, %s34
        %s536 = smul.u32 16, %s34
        %s537 = smul.u32 16, %s34
        %v539 = vld [vmem:[%s534] sm:$0xff]
        %v540 = vld [vmem:[%s534 + $0x8] sm:$0xff]
        %v541 = vld [vmem:[%s534 + $0x10] sm:$0xff]
        %v542 = vld [vmem:[%s534 + $0x18] sm:$0xff]
        %v543 = vld [vmem:[%s534 + $0x20] sm:$0xff]
        %v544 = vld [vmem:[%s534 + $0x28] sm:$0xff]
        %v545 = vld [vmem:[%s534 + $0x30] sm:$0xff]
        %v546 = vld [vmem:[%s534 + $0x38] sm:$0xff]
        %v547 = vld [vmem:[%s534 + $0x40] sm:$0xff]
        %v548 = vld [vmem:[%s534 + $0x48] sm:$0xff]
        %v549 = vld [vmem:[%s534 + $0x50] sm:$0xff]
        %v550 = vld [vmem:[%s534 + $0x58] sm:$0xff]
        %v551 = vld [vmem:[%s534 + $0x60] sm:$0xff]
        %v552 = vld [vmem:[%s534 + $0x68] sm:$0xff]
        %v553 = vld [vmem:[%s534 + $0x70] sm:$0xff]
        %v554 = vld [vmem:[%s534 + $0x78] sm:$0xff]
        %v555 = vld [vmem:[%s534 + $0x80] sm:$0xff]
        %v556 = vld [vmem:[%s534 + $0x88] sm:$0xff]
        %v557 = vld [vmem:[%s534 + $0x90] sm:$0xff]
        %v558 = vld [vmem:[%s534 + $0x98] sm:$0xff]
        %v559 = vld [vmem:[%s534 + $0xa0] sm:$0xff]
        %v560 = vld [vmem:[%s534 + $0xa8] sm:$0xff]
        %v561 = vld [vmem:[%s534 + $0xb0] sm:$0xff]
        %v562 = vld [vmem:[%s534 + $0xb8] sm:$0xff]
        %v563 = vld [vmem:[%s534 + $0xc0] sm:$0xff]
        %v564 = vld [vmem:[%s534 + $0xc8] sm:$0xff]
        %v565 = vld [vmem:[%s534 + $0xd0] sm:$0xff]
        %v566 = vld [vmem:[%s534 + $0xd8] sm:$0xff]
        %v567 = vld [vmem:[%s534 + $0xe0] sm:$0xff]
        %v568 = vld [vmem:[%s534 + $0xe8] sm:$0xff]
        %v569 = vld [vmem:[%s534 + $0xf0] sm:$0xff]
        %v570 = vld [vmem:[%s534 + $0xf8] sm:$0xff]
        %v571 = vld [vmem:[%s534 + $0x100] sm:$0xff]
        %v572 = vld [vmem:[%s534 + $0x108] sm:$0xff]
        %v573 = vld [vmem:[%s534 + $0x110] sm:$0xff]
        %v574 = vld [vmem:[%s534 + $0x118] sm:$0xff]
        %v575 = vld [vmem:[%s534 + $0x120] sm:$0xff]
        %v576 = vld [vmem:[%s534 + $0x128] sm:$0xff]
        %v577 = vld [vmem:[%s534 + $0x130] sm:$0xff]
        %v578 = vld [vmem:[%s534 + $0x138] sm:$0xff]
        %v579 = vld [vmem:[%s534 + $0x140] sm:$0xff]
        %v580 = vld [vmem:[%s534 + $0x148] sm:$0xff]
        %v581 = vld [vmem:[%s534 + $0x150] sm:$0xff]
        %v582 = vld [vmem:[%s534 + $0x158] sm:$0xff]
        %v583 = vld [vmem:[%s534 + $0x160] sm:$0xff]
        %v584 = vld [vmem:[%s534 + $0x168] sm:$0xff]
        %v585 = vld [vmem:[%s534 + $0x170] sm:$0xff]
        %v586 = vld [vmem:[%s534 + $0x178] sm:$0xff]
        %v587 = vld [vmem:[%s534 + $0x180] sm:$0xff]
        %v588 = vld [vmem:[%s534 + $0x188] sm:$0xff]
        %v589 = vld [vmem:[%s534 + $0x190] sm:$0xff]
        %v590 = vld [vmem:[%s534 + $0x198] sm:$0xff]
        %v591 = vld [vmem:[%s534 + $0x1a0] sm:$0xff]
        %v592 = vld [vmem:[%s534 + $0x1a8] sm:$0xff]
        %v593 = vld [vmem:[%s534 + $0x1b0] sm:$0xff]
        %v594 = vld [vmem:[%s534 + $0x1b8] sm:$0xff]
        %v595 = vld [vmem:[%s534 + $0x1c0] sm:$0xff]
        %v596 = vld [vmem:[%s534 + $0x1c8] sm:$0xff]
        %v597 = vld [vmem:[%s534 + $0x1d0] sm:$0xff]
        %v598 = vld [vmem:[%s534 + $0x1d8] sm:$0xff]
        %v599 = vld [vmem:[%s534 + $0x1e0] sm:$0xff]
        %v600 = vld [vmem:[%s534 + $0x1e8] sm:$0xff]
        %v601 = vld [vmem:[%s534 + $0x1f0] sm:$0xff]
        %v602 = vld [vmem:[%s534 + $0x1f8] sm:$0xff]
        %v603 = vld [vmem:[%s534 + $0x200] sm:$0xff]
        %v604 = vld [vmem:[%s534 + $0x208] sm:$0xff]
        %v605 = vld [vmem:[%s534 + $0x210] sm:$0xff]
        %v606 = vld [vmem:[%s534 + $0x218] sm:$0xff]
        %v607 = vld [vmem:[%s534 + $0x220] sm:$0xff]
        %v608 = vld [vmem:[%s534 + $0x228] sm:$0xff]
        %v609 = vld [vmem:[%s534 + $0x230] sm:$0xff]
        %v610 = vld [vmem:[%s534 + $0x238] sm:$0xff]
        %v611 = vld [vmem:[%s534 + $0x240] sm:$0xff]
        %v612 = vld [vmem:[%s534 + $0x248] sm:$0xff]
        %v613 = vld [vmem:[%s534 + $0x250] sm:$0xff]
        %v614 = vld [vmem:[%s534 + $0x258] sm:$0xff]
        %v615 = vld [vmem:[%s534 + $0x260] sm:$0xff]
        %v616 = vld [vmem:[%s534 + $0x268] sm:$0xff]
        %v617 = vld [vmem:[%s534 + $0x270] sm:$0xff]
        %v618 = vld [vmem:[%s534 + $0x278] sm:$0xff]
        %v619 = vld [vmem:[%s534 + $0x280] sm:$0xff]
        %v620 = vld [vmem:[%s534 + $0x288] sm:$0xff]
        %v621 = vld [vmem:[%s534 + $0x290] sm:$0xff]
        %v622 = vld [vmem:[%s534 + $0x298] sm:$0xff]
        %v623 = vld [vmem:[%s534 + $0x2a0] sm:$0xff]
        %v624 = vld [vmem:[%s534 + $0x2a8] sm:$0xff]
        %v625 = vld [vmem:[%s534 + $0x2b0] sm:$0xff]
        %v626 = vld [vmem:[%s534 + $0x2b8] sm:$0xff]
        %v627 = vld [vmem:[%s534 + $0x2c0] sm:$0xff]
        %v628 = vld [vmem:[%s534 + $0x2c8] sm:$0xff]
        %v629 = vld [vmem:[%s534 + $0x2d0] sm:$0xff]
        %v630 = vld [vmem:[%s534 + $0x2d8] sm:$0xff]
        %v631 = vld [vmem:[%s534 + $0x2e0] sm:$0xff]
        %v632 = vld [vmem:[%s534 + $0x2e8] sm:$0xff]
        %v633 = vld [vmem:[%s534 + $0x2f0] sm:$0xff]
        %v634 = vld [vmem:[%s534 + $0x2f8] sm:$0xff]
        %v635 = vld [vmem:[%s534 + $0x300] sm:$0xff]
        %v636 = vld [vmem:[%s534 + $0x308] sm:$0xff]
        %v637 = vld [vmem:[%s534 + $0x310] sm:$0xff]
        %v638 = vld [vmem:[%s534 + $0x318] sm:$0xff]
        %v639 = vld [vmem:[%s534 + $0x320] sm:$0xff]
        %v640 = vld [vmem:[%s534 + $0x328] sm:$0xff]
        %v641 = vld [vmem:[%s534 + $0x330] sm:$0xff]
        %v642 = vld [vmem:[%s534 + $0x338] sm:$0xff]
        %v643 = vld [vmem:[%s534 + $0x340] sm:$0xff]
        %v644 = vld [vmem:[%s534 + $0x348] sm:$0xff]
        %v645 = vld [vmem:[%s534 + $0x350] sm:$0xff]
        %v646 = vld [vmem:[%s534 + $0x358] sm:$0xff]
        %v647 = vld [vmem:[%s534 + $0x360] sm:$0xff]
        %v648 = vld [vmem:[%s534 + $0x368] sm:$0xff]
        %v649 = vld [vmem:[%s534 + $0x370] sm:$0xff]
        %v650 = vld [vmem:[%s534 + $0x378] sm:$0xff]
        %v651 = vpack.c.bf16 %v546, %v539
        %v652 = vpack.c.bf16 %v547, %v540
        %v653 = vpack.c.bf16 %v548, %v541
        %v654 = vpack.c.bf16 %v549, %v542
        %v655 = vpack.c.bf16 %v550, %v543
        %v656 = vpack.c.bf16 %v551, %v544
        %v657 = vpack.c.bf16 %v552, %v545
        %v658 = vpack.c.bf16 %v560, %v553
        %v659 = vpack.c.bf16 %v561, %v554
        %v660 = vpack.c.bf16 %v562, %v555
        %v661 = vpack.c.bf16 %v563, %v556
        %v662 = vpack.c.bf16 %v564, %v557
        %v663 = vpack.c.bf16 %v565, %v558
        %v664 = vpack.c.bf16 %v566, %v559
        %v665 = vpack.c.bf16 %v574, %v567
        %v666 = vpack.c.bf16 %v575, %v568
        %v667 = vpack.c.bf16 %v576, %v569
        %v668 = vpack.c.bf16 %v577, %v570
        %v669 = vpack.c.bf16 %v578, %v571
        %v670 = vpack.c.bf16 %v579, %v572
        %v671 = vpack.c.bf16 %v580, %v573
        %v672 = vpack.c.bf16 %v588, %v581
        %v673 = vpack.c.bf16 %v589, %v582
        %v674 = vpack.c.bf16 %v590, %v583
        %v675 = vpack.c.bf16 %v591, %v584
        %v676 = vpack.c.bf16 %v592, %v585
        %v677 = vpack.c.bf16 %v593, %v586
        %v678 = vpack.c.bf16 %v594, %v587
        %v679 = vpack.c.bf16 %v602, %v595
        %v680 = vpack.c.bf16 %v603, %v596
        %v681 = vpack.c.bf16 %v604, %v597
        %v682 = vpack.c.bf16 %v605, %v598
        %v683 = vpack.c.bf16 %v606, %v599
        %v684 = vpack.c.bf16 %v607, %v600
        %v685 = vpack.c.bf16 %v608, %v601
        %v686 = vpack.c.bf16 %v616, %v609
        %v687 = vpack.c.bf16 %v617, %v610
        %v688 = vpack.c.bf16 %v618, %v611
        %v689 = vpack.c.bf16 %v619, %v612
        %v690 = vpack.c.bf16 %v620, %v613
        %v691 = vpack.c.bf16 %v621, %v614
        %v692 = vpack.c.bf16 %v622, %v615
        %v693 = vpack.c.bf16 %v630, %v623
        %v694 = vpack.c.bf16 %v631, %v624
        %v695 = vpack.c.bf16 %v632, %v625
        %v696 = vpack.c.bf16 %v633, %v626
        %v697 = vpack.c.bf16 %v634, %v627
        %v698 = vpack.c.bf16 %v635, %v628
        %v699 = vpack.c.bf16 %v636, %v629
        %v700 = vpack.c.bf16 %v644, %v637
        %v701 = vpack.c.bf16 %v645, %v638
        %v702 = vpack.c.bf16 %v646, %v639
        %v703 = vpack.c.bf16 %v647, %v640
        %v704 = vpack.c.bf16 %v648, %v641
        %v705 = vpack.c.bf16 %v649, %v642
        %v706 = vpack.c.bf16 %v650, %v643
        %v707 = vld [vmem:[%s1] sm:$0xff]
        %v708 = vld [vmem:[%s1 + $0x8] sm:$0xff]
        %v709 = vld [vmem:[%s1 + $0x10] sm:$0xff]
        %v710 = vld [vmem:[%s1 + $0x18] sm:$0xff]
        %v711 = vld [vmem:[%s1 + $0x20] sm:$0xff]
        %v712 = vld [vmem:[%s1 + $0x28] sm:$0xff]
        %v713 = vld [vmem:[%s1 + $0x30] sm:$0xff]
        %v714 = vld [vmem:[%s1 + $0x38] sm:$0xff]
        %v715 = vld [vmem:[%s1 + $0x40] sm:$0xff]
        %v716 = vld [vmem:[%s1 + $0x48] sm:$0xff]
        %v717 = vld [vmem:[%s1 + $0x50] sm:$0xff]
        %v718 = vld [vmem:[%s1 + $0x58] sm:$0xff]
        %v719 = vld [vmem:[%s1 + $0x60] sm:$0xff]
        %v720 = vld [vmem:[%s1 + $0x68] sm:$0xff]
        %v721 = vld [vmem:[%s1 + $0x70] sm:$0xff]
        %v722 = vld [vmem:[%s1 + $0x78] sm:$0xff]
        %v723 = vld [vmem:[%s1 + $0x80] sm:$0xff]
        %v724 = vld [vmem:[%s1 + $0x88] sm:$0xff]
        %v725 = vld [vmem:[%s1 + $0x90] sm:$0xff]
        %v726 = vld [vmem:[%s1 + $0x98] sm:$0xff]
        %v727 = vld [vmem:[%s1 + $0xa0] sm:$0xff]
        %v728 = vld [vmem:[%s1 + $0xa8] sm:$0xff]
        %v729 = vld [vmem:[%s1 + $0xb0] sm:$0xff]
        %v730 = vld [vmem:[%s1 + $0xb8] sm:$0xff]
        %v731 = vld [vmem:[%s1 + $0xc0] sm:$0xff]
        %v732 = vld [vmem:[%s1 + $0xc8] sm:$0xff]
        %v733 = vld [vmem:[%s1 + $0xd0] sm:$0xff]
        %v734 = vld [vmem:[%s1 + $0xd8] sm:$0xff]
        %v735 = vld [vmem:[%s1 + $0xe0] sm:$0xff]
        %v736 = vld [vmem:[%s1 + $0xe8] sm:$0xff]
        %v737 = vld [vmem:[%s1 + $0xf0] sm:$0xff]
        %v738 = vld [vmem:[%s1 + $0xf8] sm:$0xff]
        %v739 = vld [vmem:[%s1 + $0x100] sm:$0xff]
        %v740 = vld [vmem:[%s1 + $0x108] sm:$0xff]
        %v741 = vld [vmem:[%s1 + $0x110] sm:$0xff]
        %v742 = vld [vmem:[%s1 + $0x118] sm:$0xff]
        %v743 = vld [vmem:[%s1 + $0x120] sm:$0xff]
        %v744 = vld [vmem:[%s1 + $0x128] sm:$0xff]
        %v745 = vld [vmem:[%s1 + $0x130] sm:$0xff]
        %v746 = vld [vmem:[%s1 + $0x138] sm:$0xff]
        %v747 = vld [vmem:[%s1 + $0x140] sm:$0xff]
        %v748 = vld [vmem:[%s1 + $0x148] sm:$0xff]
        %v749 = vld [vmem:[%s1 + $0x150] sm:$0xff]
        %v750 = vld [vmem:[%s1 + $0x158] sm:$0xff]
        %v751 = vld [vmem:[%s1 + $0x160] sm:$0xff]
        %v752 = vld [vmem:[%s1 + $0x168] sm:$0xff]
        %v753 = vld [vmem:[%s1 + $0x170] sm:$0xff]
        %v754 = vld [vmem:[%s1 + $0x178] sm:$0xff]
        %v755 = vld [vmem:[%s1 + $0x180] sm:$0xff]
        %v756 = vld [vmem:[%s1 + $0x188] sm:$0xff]
        %v757 = vld [vmem:[%s1 + $0x190] sm:$0xff]
        %v758 = vld [vmem:[%s1 + $0x198] sm:$0xff]
        %v759 = vld [vmem:[%s1 + $0x1a0] sm:$0xff]
        %v760 = vld [vmem:[%s1 + $0x1a8] sm:$0xff]
        %v761 = vld [vmem:[%s1 + $0x1b0] sm:$0xff]
        %v762 = vld [vmem:[%s1 + $0x1b8] sm:$0xff]
        %v763 = vld [vmem:[%s1 + $0x1c0] sm:$0xff]
        %v764 = vld [vmem:[%s1 + $0x1c8] sm:$0xff]
        %v765 = vld [vmem:[%s1 + $0x1d0] sm:$0xff]
        %v766 = vld [vmem:[%s1 + $0x1d8] sm:$0xff]
        %v767 = vld [vmem:[%s1 + $0x1e0] sm:$0xff]
        %v768 = vld [vmem:[%s1 + $0x1e8] sm:$0xff]
        %v769 = vld [vmem:[%s1 + $0x1f0] sm:$0xff]
        %v770 = vld [vmem:[%s1 + $0x1f8] sm:$0xff]
        %v771 = vld [vmem:[%s1 + $0x200] sm:$0xff]
        %v772 = vld [vmem:[%s1 + $0x208] sm:$0xff]
        %v773 = vld [vmem:[%s1 + $0x210] sm:$0xff]
        %v774 = vld [vmem:[%s1 + $0x218] sm:$0xff]
        %v775 = vld [vmem:[%s1 + $0x220] sm:$0xff]
        %v776 = vld [vmem:[%s1 + $0x228] sm:$0xff]
        %v777 = vld [vmem:[%s1 + $0x230] sm:$0xff]
        %v778 = vld [vmem:[%s1 + $0x238] sm:$0xff]
        %v779 = vld [vmem:[%s1 + $0x240] sm:$0xff]
        %v780 = vld [vmem:[%s1 + $0x248] sm:$0xff]
        %v781 = vld [vmem:[%s1 + $0x250] sm:$0xff]
        %v782 = vld [vmem:[%s1 + $0x258] sm:$0xff]
        %v783 = vld [vmem:[%s1 + $0x260] sm:$0xff]
        %v784 = vld [vmem:[%s1 + $0x268] sm:$0xff]
        %v785 = vld [vmem:[%s1 + $0x270] sm:$0xff]
        %v786 = vld [vmem:[%s1 + $0x278] sm:$0xff]
        %v787 = vld [vmem:[%s1 + $0x280] sm:$0xff]
        %v788 = vld [vmem:[%s1 + $0x288] sm:$0xff]
        %v789 = vld [vmem:[%s1 + $0x290] sm:$0xff]
        %v790 = vld [vmem:[%s1 + $0x298] sm:$0xff]
        %v791 = vld [vmem:[%s1 + $0x2a0] sm:$0xff]
        %v792 = vld [vmem:[%s1 + $0x2a8] sm:$0xff]
        %v793 = vld [vmem:[%s1 + $0x2b0] sm:$0xff]
        %v794 = vld [vmem:[%s1 + $0x2b8] sm:$0xff]
        %v795 = vld [vmem:[%s1 + $0x2c0] sm:$0xff]
        %v796 = vld [vmem:[%s1 + $0x2c8] sm:$0xff]
        %v797 = vld [vmem:[%s1 + $0x2d0] sm:$0xff]
        %v798 = vld [vmem:[%s1 + $0x2d8] sm:$0xff]
        %v799 = vld [vmem:[%s1 + $0x2e0] sm:$0xff]
        %v800 = vld [vmem:[%s1 + $0x2e8] sm:$0xff]
        %v801 = vld [vmem:[%s1 + $0x2f0] sm:$0xff]
        %v802 = vld [vmem:[%s1 + $0x2f8] sm:$0xff]
        %v803 = vld [vmem:[%s1 + $0x300] sm:$0xff]
        %v804 = vld [vmem:[%s1 + $0x308] sm:$0xff]
        %v805 = vld [vmem:[%s2] sm:$0x3]
        %v807 = vperm.slane %v805, 0
        %v808 = vperm.slane %v805, 1
        %v909 = vunpack.c.l.b16 %v707
        %v910 = vunpack.c.h.b16 %v707
        %v911 = vunpack.c.l.b16 %v708
        %v912 = vunpack.c.h.b16 %v708
        %v913 = vunpack.c.l.b16 %v709
        %v914 = vunpack.c.h.b16 %v709
        %v915 = vunpack.c.l.b16 %v710
        %v916 = vunpack.c.h.b16 %v710
        %v917 = vunpack.c.l.b16 %v711
        %v918 = vunpack.c.h.b16 %v711
        %v919 = vunpack.c.l.b16 %v712
        %v920 = vunpack.c.h.b16 %v712
        %v921 = vunpack.c.l.b16 %v713
        %v922 = vunpack.c.h.b16 %v713
        %v923 = vunpack.c.l.b16 %v714
        %v924 = vunpack.c.h.b16 %v714
        %v925 = vunpack.c.l.b16 %v715
        %v926 = vunpack.c.h.b16 %v715
        %v927 = vunpack.c.l.b16 %v716
        %v928 = vunpack.c.h.b16 %v716
        %v929 = vunpack.c.l.b16 %v717
        %v930 = vunpack.c.h.b16 %v717
        %v931 = vunpack.c.l.b16 %v718
        %v932 = vunpack.c.h.b16 %v718
        %v933 = vunpack.c.l.b16 %v719
        %v934 = vunpack.c.h.b16 %v719
        %v935 = vunpack.c.l.b16 %v720
        %v936 = vunpack.c.h.b16 %v720
        %v937 = vunpack.c.l.b16 %v721
        %v938 = vunpack.c.h.b16 %v721
        %v939 = vunpack.c.l.b16 %v722
        %v940 = vunpack.c.h.b16 %v722
        %v941 = vunpack.c.l.b16 %v723
        %v942 = vunpack.c.h.b16 %v723
        %v943 = vunpack.c.l.b16 %v724
        %v944 = vunpack.c.h.b16 %v724
        %v945 = vunpack.c.l.b16 %v725
        %v946 = vunpack.c.h.b16 %v725
        %v947 = vunpack.c.l.b16 %v726
        %v948 = vunpack.c.h.b16 %v726
        %v949 = vunpack.c.l.b16 %v727
        %v950 = vunpack.c.h.b16 %v727
        %v951 = vunpack.c.l.b16 %v728
        %v952 = vunpack.c.h.b16 %v728
        %v953 = vunpack.c.l.b16 %v729
        %v954 = vunpack.c.h.b16 %v729
        %v955 = vunpack.c.l.b16 %v730
        %v956 = vunpack.c.h.b16 %v730
        %v957 = vunpack.c.l.b16 %v731
        %v958 = vunpack.c.h.b16 %v731
        %v959 = vunpack.c.l.b16 %v732
        %v960 = vunpack.c.h.b16 %v732
        %v961 = vunpack.c.l.b16 %v733
        %v962 = vunpack.c.h.b16 %v733
        %v963 = vunpack.c.l.b16 %v734
        %v964 = vunpack.c.h.b16 %v734
        %v965 = vunpack.c.l.b16 %v735
        %v966 = vunpack.c.h.b16 %v735
        %v967 = vunpack.c.l.b16 %v736
        %v968 = vunpack.c.h.b16 %v736
        %v969 = vunpack.c.l.b16 %v737
        %v970 = vunpack.c.h.b16 %v737
        %v971 = vunpack.c.l.b16 %v738
        %v972 = vunpack.c.h.b16 %v738
        %v973 = vunpack.c.l.b16 %v739
        %v974 = vunpack.c.h.b16 %v739
        %v975 = vunpack.c.l.b16 %v740
        %v976 = vunpack.c.h.b16 %v740
        %v977 = vunpack.c.l.b16 %v741
        %v978 = vunpack.c.h.b16 %v741
        %v979 = vunpack.c.l.b16 %v742
        %v980 = vunpack.c.h.b16 %v742
        %v981 = vunpack.c.l.b16 %v743
        %v982 = vunpack.c.h.b16 %v743
        %v983 = vunpack.c.l.b16 %v744
        %v984 = vunpack.c.h.b16 %v744
        %v985 = vunpack.c.l.b16 %v745
        %v986 = vunpack.c.h.b16 %v745
        %v987 = vunpack.c.l.b16 %v746
        %v988 = vunpack.c.h.b16 %v746
        %v989 = vunpack.c.l.b16 %v747
        %v990 = vunpack.c.h.b16 %v747
        %v991 = vunpack.c.l.b16 %v748
        %v992 = vunpack.c.h.b16 %v748
        %v993 = vunpack.c.l.b16 %v749
        %v994 = vunpack.c.h.b16 %v749
        %v995 = vunpack.c.l.b16 %v750
        %v996 = vunpack.c.h.b16 %v750
        %v997 = vunpack.c.l.b16 %v751
        %v998 = vunpack.c.h.b16 %v751
        %v999 = vunpack.c.l.b16 %v752
        %v1000 = vunpack.c.h.b16 %v752
        %v1001 = vunpack.c.l.b16 %v753
        %v1002 = vunpack.c.h.b16 %v753
        %v1003 = vunpack.c.l.b16 %v754
        %v1004 = vunpack.c.h.b16 %v754
        %v1005 = vunpack.c.l.b16 %v755
        %v1006 = vunpack.c.h.b16 %v755
        %v1007 = vunpack.c.l.b16 %v756
        %v1008 = vunpack.c.h.b16 %v756
        %v1009 = vunpack.c.l.b16 %v757
        %v1010 = vunpack.c.h.b16 %v757
        %v1011 = vunpack.c.l.b16 %v758
        %v1012 = vunpack.c.h.b16 %v758
        %v1013 = vunpack.c.l.b16 %v759
        %v1014 = vunpack.c.h.b16 %v759
        %v1015 = vunpack.c.l.b16 %v760
        %v1016 = vunpack.c.h.b16 %v760
        %v1017 = vunpack.c.l.b16 %v761
        %v1018 = vunpack.c.h.b16 %v761
        %v1019 = vunpack.c.l.b16 %v762
        %v1020 = vunpack.c.h.b16 %v762
        %v1021 = vunpack.c.l.b16 %v763
        %v1022 = vunpack.c.h.b16 %v763
        %v1023 = vunpack.c.l.b16 %v764
        %v1024 = vunpack.c.h.b16 %v764
        %v1025 = vunpack.c.l.b16 %v765
        %v1026 = vunpack.c.h.b16 %v765
        %v1027 = vunpack.c.l.b16 %v766
        %v1028 = vunpack.c.h.b16 %v766
        %v1029 = vunpack.c.l.b16 %v767
        %v1030 = vunpack.c.h.b16 %v767
        %v1031 = vunpack.c.l.b16 %v768
        %v1032 = vunpack.c.h.b16 %v768
        %v1033 = vunpack.c.l.b16 %v769
        %v1034 = vunpack.c.h.b16 %v769
        %v1035 = vunpack.c.l.b16 %v770
        %v1036 = vunpack.c.h.b16 %v770
        %v1037 = vunpack.c.l.b16 %v771
        %v1038 = vunpack.c.h.b16 %v771
        %v1039 = vunpack.c.l.b16 %v772
        %v1040 = vunpack.c.h.b16 %v772
        %v1041 = vunpack.c.l.b16 %v773
        %v1042 = vunpack.c.h.b16 %v773
        %v1043 = vunpack.c.l.b16 %v774
        %v1044 = vunpack.c.h.b16 %v774
        %v1045 = vunpack.c.l.b16 %v775
        %v1046 = vunpack.c.h.b16 %v775
        %v1047 = vunpack.c.l.b16 %v776
        %v1048 = vunpack.c.h.b16 %v776
        %v1049 = vunpack.c.l.b16 %v777
        %v1050 = vunpack.c.h.b16 %v777
        %v1051 = vunpack.c.l.b16 %v778
        %v1052 = vunpack.c.h.b16 %v778
        %v1053 = vunpack.c.l.b16 %v779
        %v1054 = vunpack.c.h.b16 %v779
        %v1055 = vunpack.c.l.b16 %v780
        %v1056 = vunpack.c.h.b16 %v780
        %v1057 = vunpack.c.l.b16 %v781
        %v1058 = vunpack.c.h.b16 %v781
        %v1059 = vunpack.c.l.b16 %v782
        %v1060 = vunpack.c.h.b16 %v782
        %v1061 = vunpack.c.l.b16 %v783
        %v1062 = vunpack.c.h.b16 %v783
        %v1063 = vunpack.c.l.b16 %v784
        %v1064 = vunpack.c.h.b16 %v784
        %v1065 = vunpack.c.l.b16 %v785
        %v1066 = vunpack.c.h.b16 %v785
        %v1067 = vunpack.c.l.b16 %v786
        %v1068 = vunpack.c.h.b16 %v786
        %v1069 = vunpack.c.l.b16 %v787
        %v1070 = vunpack.c.h.b16 %v787
        %v1071 = vunpack.c.l.b16 %v788
        %v1072 = vunpack.c.h.b16 %v788
        %v1073 = vunpack.c.l.b16 %v789
        %v1074 = vunpack.c.h.b16 %v789
        %v1075 = vunpack.c.l.b16 %v790
        %v1076 = vunpack.c.h.b16 %v790
        %v1077 = vunpack.c.l.b16 %v791
        %v1078 = vunpack.c.h.b16 %v791
        %v1079 = vunpack.c.l.b16 %v792
        %v1080 = vunpack.c.h.b16 %v792
        %v1081 = vunpack.c.l.b16 %v793
        %v1082 = vunpack.c.h.b16 %v793
        %v1083 = vunpack.c.l.b16 %v794
        %v1084 = vunpack.c.h.b16 %v794
        %v1085 = vunpack.c.l.b16 %v795
        %v1086 = vunpack.c.h.b16 %v795
        %v1087 = vunpack.c.l.b16 %v796
        %v1088 = vunpack.c.h.b16 %v796
        %v1089 = vunpack.c.l.b16 %v797
        %v1090 = vunpack.c.h.b16 %v797
        %v1091 = vunpack.c.l.b16 %v798
        %v1092 = vunpack.c.h.b16 %v798
        %v1093 = vunpack.c.l.b16 %v799
        %v1094 = vunpack.c.h.b16 %v799
        %v1095 = vunpack.c.l.b16 %v800
        %v1096 = vunpack.c.h.b16 %v800
        %v1097 = vunpack.c.l.b16 %v801
        %v1098 = vunpack.c.h.b16 %v801
        %v1099 = vunpack.c.l.b16 %v802
        %v1100 = vunpack.c.h.b16 %v802
        %v1101 = vunpack.c.l.b16 %v803
        %v1102 = vunpack.c.h.b16 %v803
        %v1103 = vunpack.c.l.b16 %v804
        %v1104 = vunpack.c.h.b16 %v804
        %v1105 = vpack.c.b16 %v911, %v909
        %v1106 = vpack.c.b16 %v912, %v910
        %v1107 = vpack.c.b16 %v915, %v913
        %v1108 = vpack.c.b16 %v916, %v914
        %v1109 = vpack.c.b16 %v919, %v917
        %v1110 = vpack.c.b16 %v920, %v918
        %v1111 = vpack.c.b16 %v923, %v921
        %v1112 = vpack.c.b16 %v924, %v922
        %v1113 = vpack.c.b16 %v927, %v925
        %v1114 = vpack.c.b16 %v928, %v926
        %v1115 = vpack.c.b16 %v931, %v929
        %v1116 = vpack.c.b16 %v932, %v930
        %v1117 = vpack.c.b16 %v935, %v933
        %v1118 = vpack.c.b16 %v936, %v934
        %v1119 = vpack.c.b16 %v939, %v937
        %v1120 = vpack.c.b16 %v940, %v938
        %v1121 = vpack.c.b16 %v943, %v941
        %v1122 = vpack.c.b16 %v944, %v942
        %v1123 = vpack.c.b16 %v947, %v945
        %v1124 = vpack.c.b16 %v948, %v946
        %v1125 = vpack.c.b16 %v951, %v949
        %v1126 = vpack.c.b16 %v952, %v950
        %v1127 = vpack.c.b16 %v955, %v953
        %v1128 = vpack.c.b16 %v956, %v954
        %v1129 = vpack.c.b16 %v959, %v957
        %v1130 = vpack.c.b16 %v960, %v958
        %v1131 = vpack.c.b16 %v963, %v961
        %v1132 = vpack.c.b16 %v964, %v962
        %v1133 = vpack.c.b16 %v967, %v965
        %v1134 = vpack.c.b16 %v968, %v966
        %v1135 = vpack.c.b16 %v971, %v969
        %v1136 = vpack.c.b16 %v972, %v970
        %v1137 = vpack.c.b16 %v975, %v973
        %v1138 = vpack.c.b16 %v976, %v974
        %v1139 = vpack.c.b16 %v979, %v977
        %v1140 = vpack.c.b16 %v980, %v978
        %v1141 = vpack.c.b16 %v983, %v981
        %v1142 = vpack.c.b16 %v984, %v982
        %v1143 = vpack.c.b16 %v987, %v985
        %v1144 = vpack.c.b16 %v988, %v986
        %v1145 = vpack.c.b16 %v991, %v989
        %v1146 = vpack.c.b16 %v992, %v990
        %v1147 = vpack.c.b16 %v995, %v993
        %v1148 = vpack.c.b16 %v996, %v994
        %v1149 = vpack.c.b16 %v999, %v997
        %v1150 = vpack.c.b16 %v1000, %v998
        %v1151 = vpack.c.b16 %v1003, %v1001
        %v1152 = vpack.c.b16 %v1004, %v1002
        %v1153 = vpack.c.b16 %v1007, %v1005
        %v1154 = vpack.c.b16 %v1008, %v1006
        %v1155 = vpack.c.b16 %v1011, %v1009
        %v1156 = vpack.c.b16 %v1012, %v1010
        %v1157 = vpack.c.b16 %v1015, %v1013
        %v1158 = vpack.c.b16 %v1016, %v1014
        %v1159 = vpack.c.b16 %v1019, %v1017
        %v1160 = vpack.c.b16 %v1020, %v1018
        %v1161 = vpack.c.b16 %v1023, %v1021
        %v1162 = vpack.c.b16 %v1024, %v1022
        %v1163 = vpack.c.b16 %v1027, %v1025
        %v1164 = vpack.c.b16 %v1028, %v1026
        %v1165 = vpack.c.b16 %v1031, %v1029
        %v1166 = vpack.c.b16 %v1032, %v1030
        %v1167 = vpack.c.b16 %v1035, %v1033
        %v1168 = vpack.c.b16 %v1036, %v1034
        %v1169 = vpack.c.b16 %v1039, %v1037
        %v1170 = vpack.c.b16 %v1040, %v1038
        %v1171 = vpack.c.b16 %v1043, %v1041
        %v1172 = vpack.c.b16 %v1044, %v1042
        %v1173 = vpack.c.b16 %v1047, %v1045
        %v1174 = vpack.c.b16 %v1048, %v1046
        %v1175 = vpack.c.b16 %v1051, %v1049
        %v1176 = vpack.c.b16 %v1052, %v1050
        %v1177 = vpack.c.b16 %v1055, %v1053
        %v1178 = vpack.c.b16 %v1056, %v1054
        %v1179 = vpack.c.b16 %v1059, %v1057
        %v1180 = vpack.c.b16 %v1060, %v1058
        %v1181 = vpack.c.b16 %v1063, %v1061
        %v1182 = vpack.c.b16 %v1064, %v1062
        %v1183 = vpack.c.b16 %v1067, %v1065
        %v1184 = vpack.c.b16 %v1068, %v1066
        %v1185 = vpack.c.b16 %v1071, %v1069
        %v1186 = vpack.c.b16 %v1072, %v1070
        %v1187 = vpack.c.b16 %v1075, %v1073
        %v1188 = vpack.c.b16 %v1076, %v1074
        %v1189 = vpack.c.b16 %v1079, %v1077
        %v1190 = vpack.c.b16 %v1080, %v1078
        %v1191 = vpack.c.b16 %v1083, %v1081
        %v1192 = vpack.c.b16 %v1084, %v1082
        %v1193 = vpack.c.b16 %v1087, %v1085
        %v1194 = vpack.c.b16 %v1088, %v1086
        %v1195 = vpack.c.b16 %v1091, %v1089
        %v1196 = vpack.c.b16 %v1092, %v1090
        %v1197 = vpack.c.b16 %v1095, %v1093
        %v1198 = vpack.c.b16 %v1096, %v1094
        %v1199 = vpack.c.b16 %v1099, %v1097
        %v1200 = vpack.c.b16 %v1100, %v1098
        %v1201 = vpack.c.b16 %v1103, %v1101
        %v1202 = vpack.c.b16 %v1104, %v1102
        %vm1301 = vcmask 130048
        %v1303 = vsel %vm1301, %v657, 0
        %v1306 = vsel %vm1301, %v664, 0
        %v1309 = vsel %vm1301, %v671, 0
        %v1312 = vsel %vm1301, %v678, 0
        %v1315 = vsel %vm1301, %v685, 0
        %v1318 = vsel %vm1301, %v692, 0
        %v1321 = vsel %vm1301, %v699, 0
        %v1324 = vsel %vm1301, %v706, 0
        %1326 = vmatpush.bf16.msra.mxu0 %v1119
        %1327 = vmatpush.bf16.msra.mxu0 %v1117
        %1328 = vmatpush.bf16.msra.mxu0 %v1115
        %1329 = vmatpush.bf16.msra.mxu0 %v1113
        %1330 = vmatpush.bf16.msra.mxu0 %v1111
        %1331 = vmatpush.bf16.msra.mxu0 %v1109
        %1332 = vmatpush.bf16.msra.mxu0 %v1107
        %1333 = vmatpush.bf16.msra.mxu0 %v1105
        %1334 = vmatmul.bf16.gmra.mxu0 %v651
        %v1335 = vpop.f32.mrf.mxu0
        %v1336 = vadd.f32 %v807, %v1335
        %v1337 = vpop.f32.mrf.mxu0
        %v1338 = vadd.f32 %v807, %v1337
        %1339 = vmatmul.bf16.gmra.mxu0 %v658
        %v1340 = vpop.f32.mrf.mxu0
        %v1341 = vadd.f32 %v807, %v1340
        %v1342 = vpop.f32.mrf.mxu0
        %v1343 = vadd.f32 %v807, %v1342
        %1344 = vmatmul.bf16.gmra.mxu0 %v665
        %v1345 = vpop.f32.mrf.mxu0
        %v1346 = vadd.f32 %v807, %v1345
        %v1347 = vpop.f32.mrf.mxu0
        %v1348 = vadd.f32 %v807, %v1347
        %1349 = vmatmul.bf16.gmra.mxu0 %v672
        %v1350 = vpop.f32.mrf.mxu0
        %v1351 = vadd.f32 %v807, %v1350
        %v1352 = vpop.f32.mrf.mxu0
        %v1353 = vadd.f32 %v807, %v1352
        %1354 = vmatmul.bf16.gmra.mxu0 %v679
        %v1355 = vpop.f32.mrf.mxu0
        %v1356 = vadd.f32 %v807, %v1355
        %v1357 = vpop.f32.mrf.mxu0
        %v1358 = vadd.f32 %v807, %v1357
        %1359 = vmatmul.bf16.gmra.mxu0 %v686
        %v1360 = vpop.f32.mrf.mxu0
        %v1361 = vadd.f32 %v807, %v1360
        %v1362 = vpop.f32.mrf.mxu0
        %v1363 = vadd.f32 %v807, %v1362
        %1364 = vmatmul.bf16.gmra.mxu0 %v693
        %v1365 = vpop.f32.mrf.mxu0
        %v1366 = vadd.f32 %v807, %v1365
        %v1367 = vpop.f32.mrf.mxu0
        %v1368 = vadd.f32 %v807, %v1367
        %1369 = vmatmul.bf16.gmra.mxu0 %v700
        %v1370 = vpop.f32.mrf.mxu0
        %v1371 = vadd.f32 %v807, %v1370
        %v1372 = vpop.f32.mrf.mxu0
        %v1373 = vadd.f32 %v807, %v1372
        %1374 = vdwg.mxu0
        %1375 = vmatpush.bf16.msra.mxu0 %v1135
        %1376 = vmatpush.bf16.msra.mxu0 %v1133
        %1377 = vmatpush.bf16.msra.mxu0 %v1131
        %1378 = vmatpush.bf16.msra.mxu0 %v1129
        %1379 = vmatpush.bf16.msra.mxu0 %v1127
        %1380 = vmatpush.bf16.msra.mxu0 %v1125
        %1381 = vmatpush.bf16.msra.mxu0 %v1123
        %1382 = vmatpush.bf16.msra.mxu0 %v1121
        %1383 = vmatmul.bf16.gmra.mxu0 %v652
        %v1384 = vpop.f32.mrf.mxu0
        %v1385 = vadd.f32 %v1336, %v1384
        %v1386 = vpop.f32.mrf.mxu0
        %v1387 = vadd.f32 %v1338, %v1386
        %1388 = vmatmul.bf16.gmra.mxu0 %v659
        %v1389 = vpop.f32.mrf.mxu0
        %v1390 = vadd.f32 %v1341, %v1389
        %v1391 = vpop.f32.mrf.mxu0
        %v1392 = vadd.f32 %v1343, %v1391
        %1393 = vmatmul.bf16.gmra.mxu0 %v666
        %v1394 = vpop.f32.mrf.mxu0
        %v1395 = vadd.f32 %v1346, %v1394
        %v1396 = vpop.f32.mrf.mxu0
        %v1397 = vadd.f32 %v1348, %v1396
        %1398 = vmatmul.bf16.gmra.mxu0 %v673
        %v1399 = vpop.f32.mrf.mxu0
        %v1400 = vadd.f32 %v1351, %v1399
        %v1401 = vpop.f32.mrf.mxu0
        %v1402 = vadd.f32 %v1353, %v1401
        %1403 = vmatmul.bf16.gmra.mxu0 %v680
        %v1404 = vpop.f32.mrf.mxu0
        %v1405 = vadd.f32 %v1356, %v1404
        %v1406 = vpop.f32.mrf.mxu0
        %v1407 = vadd.f32 %v1358, %v1406
        %1408 = vmatmul.bf16.gmra.mxu0 %v687
        %v1409 = vpop.f32.mrf.mxu0
        %v1410 = vadd.f32 %v1361, %v1409
        %v1411 = vpop.f32.mrf.mxu0
        %v1412 = vadd.f32 %v1363, %v1411
        %1413 = vmatmul.bf16.gmra.mxu0 %v694
        %v1414 = vpop.f32.mrf.mxu0
        %v1415 = vadd.f32 %v1366, %v1414
        %v1416 = vpop.f32.mrf.mxu0
        %v1417 = vadd.f32 %v1368, %v1416
        %1418 = vmatmul.bf16.gmra.mxu0 %v701
        %v1419 = vpop.f32.mrf.mxu0
        %v1420 = vadd.f32 %v1371, %v1419
        %v1421 = vpop.f32.mrf.mxu0
        %v1422 = vadd.f32 %v1373, %v1421
        %1423 = vdwg.mxu0
        %1424 = vmatpush.bf16.msra.mxu0 %v1151
        %1425 = vmatpush.bf16.msra.mxu0 %v1149
        %1426 = vmatpush.bf16.msra.mxu0 %v1147
        %1427 = vmatpush.bf16.msra.mxu0 %v1145
        %1428 = vmatpush.bf16.msra.mxu0 %v1143
        %1429 = vmatpush.bf16.msra.mxu0 %v1141
        %1430 = vmatpush.bf16.msra.mxu0 %v1139
        %1431 = vmatpush.bf16.msra.mxu0 %v1137
        %1432 = vmatmul.bf16.gmra.mxu0 %v653
        %v1433 = vpop.f32.mrf.mxu0
        %v1434 = vadd.f32 %v1385, %v1433
        %v1435 = vpop.f32.mrf.mxu0
        %v1436 = vadd.f32 %v1387, %v1435
        %1437 = vmatmul.bf16.gmra.mxu0 %v660
        %v1438 = vpop.f32.mrf.mxu0
        %v1439 = vadd.f32 %v1390, %v1438
        %v1440 = vpop.f32.mrf.mxu0
        %v1441 = vadd.f32 %v1392, %v1440
        %1442 = vmatmul.bf16.gmra.mxu0 %v667
        %v1443 = vpop.f32.mrf.mxu0
        %v1444 = vadd.f32 %v1395, %v1443
        %v1445 = vpop.f32.mrf.mxu0
        %v1446 = vadd.f32 %v1397, %v1445
        %1447 = vmatmul.bf16.gmra.mxu0 %v674
        %v1448 = vpop.f32.mrf.mxu0
        %v1449 = vadd.f32 %v1400, %v1448
        %v1450 = vpop.f32.mrf.mxu0
        %v1451 = vadd.f32 %v1402, %v1450
        %1452 = vmatmul.bf16.gmra.mxu0 %v681
        %v1453 = vpop.f32.mrf.mxu0
        %v1454 = vadd.f32 %v1405, %v1453
        %v1455 = vpop.f32.mrf.mxu0
        %v1456 = vadd.f32 %v1407, %v1455
        %1457 = vmatmul.bf16.gmra.mxu0 %v688
        %v1458 = vpop.f32.mrf.mxu0
        %v1459 = vadd.f32 %v1410, %v1458
        %v1460 = vpop.f32.mrf.mxu0
        %v1461 = vadd.f32 %v1412, %v1460
        %1462 = vmatmul.bf16.gmra.mxu0 %v695
        %v1463 = vpop.f32.mrf.mxu0
        %v1464 = vadd.f32 %v1415, %v1463
        %v1465 = vpop.f32.mrf.mxu0
        %v1466 = vadd.f32 %v1417, %v1465
        %1467 = vmatmul.bf16.gmra.mxu0 %v702
        %v1468 = vpop.f32.mrf.mxu0
        %v1469 = vadd.f32 %v1420, %v1468
        %v1470 = vpop.f32.mrf.mxu0
        %v1471 = vadd.f32 %v1422, %v1470
        %1472 = vdwg.mxu0
        %1473 = vmatpush.bf16.msra.mxu0 %v1167
        %1474 = vmatpush.bf16.msra.mxu0 %v1165
        %1475 = vmatpush.bf16.msra.mxu0 %v1163
        %1476 = vmatpush.bf16.msra.mxu0 %v1161
        %1477 = vmatpush.bf16.msra.mxu0 %v1159
        %1478 = vmatpush.bf16.msra.mxu0 %v1157
        %1479 = vmatpush.bf16.msra.mxu0 %v1155
        %1480 = vmatpush.bf16.msra.mxu0 %v1153
        %1481 = vmatmul.bf16.gmra.mxu0 %v654
        %v1482 = vpop.f32.mrf.mxu0
        %v1483 = vadd.f32 %v1434, %v1482
        %v1484 = vpop.f32.mrf.mxu0
        %v1485 = vadd.f32 %v1436, %v1484
        %1486 = vmatmul.bf16.gmra.mxu0 %v661
        %v1487 = vpop.f32.mrf.mxu0
        %v1488 = vadd.f32 %v1439, %v1487
        %v1489 = vpop.f32.mrf.mxu0
        %v1490 = vadd.f32 %v1441, %v1489
        %1491 = vmatmul.bf16.gmra.mxu0 %v668
        %v1492 = vpop.f32.mrf.mxu0
        %v1493 = vadd.f32 %v1444, %v1492
        %v1494 = vpop.f32.mrf.mxu0
        %v1495 = vadd.f32 %v1446, %v1494
        %1496 = vmatmul.bf16.gmra.mxu0 %v675
        %v1497 = vpop.f32.mrf.mxu0
        %v1498 = vadd.f32 %v1449, %v1497
        %v1499 = vpop.f32.mrf.mxu0
        %v1500 = vadd.f32 %v1451, %v1499
        %1501 = vmatmul.bf16.gmra.mxu0 %v682
        %v1502 = vpop.f32.mrf.mxu0
        %v1503 = vadd.f32 %v1454, %v1502
        %v1504 = vpop.f32.mrf.mxu0
        %v1505 = vadd.f32 %v1456, %v1504
        %1506 = vmatmul.bf16.gmra.mxu0 %v689
        %v1507 = vpop.f32.mrf.mxu0
        %v1508 = vadd.f32 %v1459, %v1507
        %v1509 = vpop.f32.mrf.mxu0
        %v1510 = vadd.f32 %v1461, %v1509
        %1511 = vmatmul.bf16.gmra.mxu0 %v696
        %v1512 = vpop.f32.mrf.mxu0
        %v1513 = vadd.f32 %v1464, %v1512
        %v1514 = vpop.f32.mrf.mxu0
        %v1515 = vadd.f32 %v1466, %v1514
        %1516 = vmatmul.bf16.gmra.mxu0 %v703
        %v1517 = vpop.f32.mrf.mxu0
        %v1518 = vadd.f32 %v1469, %v1517
        %v1519 = vpop.f32.mrf.mxu0
        %v1520 = vadd.f32 %v1471, %v1519
        %1521 = vdwg.mxu0
        %1522 = vmatpush.bf16.msra.mxu0 %v1183
        %1523 = vmatpush.bf16.msra.mxu0 %v1181
        %1524 = vmatpush.bf16.msra.mxu0 %v1179
        %1525 = vmatpush.bf16.msra.mxu0 %v1177
        %1526 = vmatpush.bf16.msra.mxu0 %v1175
        %1527 = vmatpush.bf16.msra.mxu0 %v1173
        %1528 = vmatpush.bf16.msra.mxu0 %v1171
        %1529 = vmatpush.bf16.msra.mxu0 %v1169
        %1530 = vmatmul.bf16.gmra.mxu0 %v655
        %v1531 = vpop.f32.mrf.mxu0
        %v1532 = vadd.f32 %v1483, %v1531
        %v1533 = vpop.f32.mrf.mxu0
        %v1534 = vadd.f32 %v1485, %v1533
        %1535 = vmatmul.bf16.gmra.mxu0 %v662
        %v1536 = vpop.f32.mrf.mxu0
        %v1537 = vadd.f32 %v1488, %v1536
        %v1538 = vpop.f32.mrf.mxu0
        %v1539 = vadd.f32 %v1490, %v1538
        %1540 = vmatmul.bf16.gmra.mxu0 %v669
        %v1541 = vpop.f32.mrf.mxu0
        %v1542 = vadd.f32 %v1493, %v1541
        %v1543 = vpop.f32.mrf.mxu0
        %v1544 = vadd.f32 %v1495, %v1543
        %1545 = vmatmul.bf16.gmra.mxu0 %v676
        %v1546 = vpop.f32.mrf.mxu0
        %v1547 = vadd.f32 %v1498, %v1546
        %v1548 = vpop.f32.mrf.mxu0
        %v1549 = vadd.f32 %v1500, %v1548
        %1550 = vmatmul.bf16.gmra.mxu0 %v683
        %v1551 = vpop.f32.mrf.mxu0
        %v1552 = vadd.f32 %v1503, %v1551
        %v1553 = vpop.f32.mrf.mxu0
        %v1554 = vadd.f32 %v1505, %v1553
        %1555 = vmatmul.bf16.gmra.mxu0 %v690
        %v1556 = vpop.f32.mrf.mxu0
        %v1557 = vadd.f32 %v1508, %v1556
        %v1558 = vpop.f32.mrf.mxu0
        %v1559 = vadd.f32 %v1510, %v1558
        %1560 = vmatmul.bf16.gmra.mxu0 %v697
        %v1561 = vpop.f32.mrf.mxu0
        %v1562 = vadd.f32 %v1513, %v1561
        %v1563 = vpop.f32.mrf.mxu0
        %v1564 = vadd.f32 %v1515, %v1563
        %1565 = vmatmul.bf16.gmra.mxu0 %v704
        %v1566 = vpop.f32.mrf.mxu0
        %v1567 = vadd.f32 %v1518, %v1566
        %v1568 = vpop.f32.mrf.mxu0
        %v1569 = vadd.f32 %v1520, %v1568
        %1570 = vdwg.mxu0
        %1571 = vmatpush.bf16.msra.mxu0 %v1199
        %1572 = vmatpush.bf16.msra.mxu0 %v1197
        %1573 = vmatpush.bf16.msra.mxu0 %v1195
        %1574 = vmatpush.bf16.msra.mxu0 %v1193
        %1575 = vmatpush.bf16.msra.mxu0 %v1191
        %1576 = vmatpush.bf16.msra.mxu0 %v1189
        %1577 = vmatpush.bf16.msra.mxu0 %v1187
        %1578 = vmatpush.bf16.msra.mxu0 %v1185
        %1579 = vmatmul.bf16.gmra.mxu0 %v656
        %v1580 = vpop.f32.mrf.mxu0
        %v1581 = vadd.f32 %v1532, %v1580
        %v1582 = vpop.f32.mrf.mxu0
        %v1583 = vadd.f32 %v1534, %v1582
        %1584 = vmatmul.bf16.gmra.mxu0 %v663
        %v1585 = vpop.f32.mrf.mxu0
        %v1586 = vadd.f32 %v1537, %v1585
        %v1587 = vpop.f32.mrf.mxu0
        %v1588 = vadd.f32 %v1539, %v1587
        %1589 = vmatmul.bf16.gmra.mxu0 %v670
        %v1590 = vpop.f32.mrf.mxu0
        %v1591 = vadd.f32 %v1542, %v1590
        %v1592 = vpop.f32.mrf.mxu0
        %v1593 = vadd.f32 %v1544, %v1592
        %1594 = vmatmul.bf16.gmra.mxu0 %v677
        %v1595 = vpop.f32.mrf.mxu0
        %v1596 = vadd.f32 %v1547, %v1595
        %v1597 = vpop.f32.mrf.mxu0
        %v1598 = vadd.f32 %v1549, %v1597
        %1599 = vmatmul.bf16.gmra.mxu0 %v684
        %v1600 = vpop.f32.mrf.mxu0
        %v1601 = vadd.f32 %v1552, %v1600
        %v1602 = vpop.f32.mrf.mxu0
        %v1603 = vadd.f32 %v1554, %v1602
        %1604 = vmatmul.bf16.gmra.mxu0 %v691
        %v1605 = vpop.f32.mrf.mxu0
        %v1606 = vadd.f32 %v1557, %v1605
        %v1607 = vpop.f32.mrf.mxu0
        %v1608 = vadd.f32 %v1559, %v1607
        %1609 = vmatmul.bf16.gmra.mxu0 %v698
        %v1610 = vpop.f32.mrf.mxu0
        %v1611 = vadd.f32 %v1562, %v1610
        %v1612 = vpop.f32.mrf.mxu0
        %v1613 = vadd.f32 %v1564, %v1612
        %1614 = vmatmul.bf16.gmra.mxu0 %v705
        %v1615 = vpop.f32.mrf.mxu0
        %v1616 = vadd.f32 %v1567, %v1615
        %v1617 = vpop.f32.mrf.mxu0
        %v1618 = vadd.f32 %v1569, %v1617
        %1619 = vdwg.mxu0
        %1620 = vmatpush.bf16.msra.mxu0 0
        %1621 = vmatpush.bf16.msra.mxu0 0
        %1622 = vmatpush.bf16.msra.mxu0 0
        %1623 = vmatpush.bf16.msra.mxu0 0
        %1624 = vmatpush.bf16.msra.mxu0 0
        %1625 = vmatpush.bf16.msra.mxu0 0
        %1626 = vmatpush.bf16.msra.mxu0 0
        %1627 = vmatpush.bf16.msra.mxu0 %v1201
        %1628 = vmatmul.bf16.gmra.mxu0 %v1303
        %v1629 = vpop.f32.mrf.mxu0
        %v1630 = vadd.f32 %v1581, %v1629
        %v1631 = vpop.f32.mrf.mxu0
        %v1632 = vadd.f32 %v1583, %v1631
        %1633 = vmatmul.bf16.gmra.mxu0 %v1306
        %v1634 = vpop.f32.mrf.mxu0
        %v1635 = vadd.f32 %v1586, %v1634
        %v1636 = vpop.f32.mrf.mxu0
        %v1637 = vadd.f32 %v1588, %v1636
        %1638 = vmatmul.bf16.gmra.mxu0 %v1309
        %v1639 = vpop.f32.mrf.mxu0
        %v1640 = vadd.f32 %v1591, %v1639
        %v1641 = vpop.f32.mrf.mxu0
        %v1642 = vadd.f32 %v1593, %v1641
        %1643 = vmatmul.bf16.gmra.mxu0 %v1312
        %v1644 = vpop.f32.mrf.mxu0
        %v1645 = vadd.f32 %v1596, %v1644
        %v1646 = vpop.f32.mrf.mxu0
        %v1647 = vadd.f32 %v1598, %v1646
        %1648 = vmatmul.bf16.gmra.mxu0 %v1315
        %v1649 = vpop.f32.mrf.mxu0
        %v1650 = vadd.f32 %v1601, %v1649
        %v1651 = vpop.f32.mrf.mxu0
        %v1652 = vadd.f32 %v1603, %v1651
        %1653 = vmatmul.bf16.gmra.mxu0 %v1318
        %v1654 = vpop.f32.mrf.mxu0
        %v1655 = vadd.f32 %v1606, %v1654
        %v1656 = vpop.f32.mrf.mxu0
        %v1657 = vadd.f32 %v1608, %v1656
        %1658 = vmatmul.bf16.gmra.mxu0 %v1321
        %v1659 = vpop.f32.mrf.mxu0
        %v1660 = vadd.f32 %v1611, %v1659
        %v1661 = vpop.f32.mrf.mxu0
        %v1662 = vadd.f32 %v1613, %v1661
        %1663 = vmatmul.bf16.gmra.mxu0 %v1324
        %v1664 = vpop.f32.mrf.mxu0
        %v1665 = vadd.f32 %v1616, %v1664
        %v1666 = vpop.f32.mrf.mxu0
        %v1667 = vadd.f32 %v1618, %v1666
        %1668 = vdwg.mxu0
        %1669 = vmatpush.bf16.msra.mxu0 %v1120
        %1670 = vmatpush.bf16.msra.mxu0 %v1118
        %1671 = vmatpush.bf16.msra.mxu0 %v1116
        %1672 = vmatpush.bf16.msra.mxu0 %v1114
        %1673 = vmatpush.bf16.msra.mxu0 %v1112
        %1674 = vmatpush.bf16.msra.mxu0 %v1110
        %1675 = vmatpush.bf16.msra.mxu0 %v1108
        %1676 = vmatpush.bf16.msra.mxu0 %v1106
        %1677 = vmatmul.bf16.gmra.mxu0 %v651
        %v1678 = vpop.f32.mrf.mxu0
        %v1679 = vadd.f32 %v808, %v1678
        %v1680 = vpop.f32.mrf.mxu0
        %v1681 = vadd.f32 %v808, %v1680
        %1682 = vmatmul.bf16.gmra.mxu0 %v658
        %v1683 = vpop.f32.mrf.mxu0
        %v1684 = vadd.f32 %v808, %v1683
        %v1685 = vpop.f32.mrf.mxu0
        %v1686 = vadd.f32 %v808, %v1685
        %1687 = vmatmul.bf16.gmra.mxu0 %v665
        %v1688 = vpop.f32.mrf.mxu0
        %v1689 = vadd.f32 %v808, %v1688
        %v1690 = vpop.f32.mrf.mxu0
        %v1691 = vadd.f32 %v808, %v1690
        %1692 = vmatmul.bf16.gmra.mxu0 %v672
        %v1693 = vpop.f32.mrf.mxu0
        %v1694 = vadd.f32 %v808, %v1693
        %v1695 = vpop.f32.mrf.mxu0
        %v1696 = vadd.f32 %v808, %v1695
        %1697 = vmatmul.bf16.gmra.mxu0 %v679
        %v1698 = vpop.f32.mrf.mxu0
        %v1699 = vadd.f32 %v808, %v1698
        %v1700 = vpop.f32.mrf.mxu0
        %v1701 = vadd.f32 %v808, %v1700
        %1702 = vmatmul.bf16.gmra.mxu0 %v686
        %v1703 = vpop.f32.mrf.mxu0
        %v1704 = vadd.f32 %v808, %v1703
        %v1705 = vpop.f32.mrf.mxu0
        %v1706 = vadd.f32 %v808, %v1705
        %1707 = vmatmul.bf16.gmra.mxu0 %v693
        %v1708 = vpop.f32.mrf.mxu0
        %v1709 = vadd.f32 %v808, %v1708
        %v1710 = vpop.f32.mrf.mxu0
        %v1711 = vadd.f32 %v808, %v1710
        %1712 = vmatmul.bf16.gmra.mxu0 %v700
        %v1713 = vpop.f32.mrf.mxu0
        %v1714 = vadd.f32 %v808, %v1713
        %v1715 = vpop.f32.mrf.mxu0
        %v1716 = vadd.f32 %v808, %v1715
        %1717 = vdwg.mxu0
        %1718 = vmatpush.bf16.msra.mxu0 %v1136
        %1719 = vmatpush.bf16.msra.mxu0 %v1134
        %1720 = vmatpush.bf16.msra.mxu0 %v1132
        %1721 = vmatpush.bf16.msra.mxu0 %v1130
        %1722 = vmatpush.bf16.msra.mxu0 %v1128
        %1723 = vmatpush.bf16.msra.mxu0 %v1126
        %1724 = vmatpush.bf16.msra.mxu0 %v1124
        %1725 = vmatpush.bf16.msra.mxu0 %v1122
        %1726 = vmatmul.bf16.gmra.mxu0 %v652
        %v1727 = vpop.f32.mrf.mxu0
        %v1728 = vadd.f32 %v1679, %v1727
        %v1729 = vpop.f32.mrf.mxu0
        %v1730 = vadd.f32 %v1681, %v1729
        %1731 = vmatmul.bf16.gmra.mxu0 %v659
        %v1732 = vpop.f32.mrf.mxu0
        %v1733 = vadd.f32 %v1684, %v1732
        %v1734 = vpop.f32.mrf.mxu0
        %v1735 = vadd.f32 %v1686, %v1734
        %1736 = vmatmul.bf16.gmra.mxu0 %v666
        %v1737 = vpop.f32.mrf.mxu0
        %v1738 = vadd.f32 %v1689, %v1737
        %v1739 = vpop.f32.mrf.mxu0
        %v1740 = vadd.f32 %v1691, %v1739
        %1741 = vmatmul.bf16.gmra.mxu0 %v673
        %v1742 = vpop.f32.mrf.mxu0
        %v1743 = vadd.f32 %v1694, %v1742
        %v1744 = vpop.f32.mrf.mxu0
        %v1745 = vadd.f32 %v1696, %v1744
        %1746 = vmatmul.bf16.gmra.mxu0 %v680
        %v1747 = vpop.f32.mrf.mxu0
        %v1748 = vadd.f32 %v1699, %v1747
        %v1749 = vpop.f32.mrf.mxu0
        %v1750 = vadd.f32 %v1701, %v1749
        %1751 = vmatmul.bf16.gmra.mxu0 %v687
        %v1752 = vpop.f32.mrf.mxu0
        %v1753 = vadd.f32 %v1704, %v1752
        %v1754 = vpop.f32.mrf.mxu0
        %v1755 = vadd.f32 %v1706, %v1754
        %1756 = vmatmul.bf16.gmra.mxu0 %v694
        %v1757 = vpop.f32.mrf.mxu0
        %v1758 = vadd.f32 %v1709, %v1757
        %v1759 = vpop.f32.mrf.mxu0
        %v1760 = vadd.f32 %v1711, %v1759
        %1761 = vmatmul.bf16.gmra.mxu0 %v701
        %v1762 = vpop.f32.mrf.mxu0
        %v1763 = vadd.f32 %v1714, %v1762
        %v1764 = vpop.f32.mrf.mxu0
        %v1765 = vadd.f32 %v1716, %v1764
        %1766 = vdwg.mxu0
        %1767 = vmatpush.bf16.msra.mxu0 %v1152
        %1768 = vmatpush.bf16.msra.mxu0 %v1150
        %1769 = vmatpush.bf16.msra.mxu0 %v1148
        %1770 = vmatpush.bf16.msra.mxu0 %v1146
        %1771 = vmatpush.bf16.msra.mxu0 %v1144
        %1772 = vmatpush.bf16.msra.mxu0 %v1142
        %1773 = vmatpush.bf16.msra.mxu0 %v1140
        %1774 = vmatpush.bf16.msra.mxu0 %v1138
        %1775 = vmatmul.bf16.gmra.mxu0 %v653
        %v1776 = vpop.f32.mrf.mxu0
        %v1777 = vadd.f32 %v1728, %v1776
        %v1778 = vpop.f32.mrf.mxu0
        %v1779 = vadd.f32 %v1730, %v1778
        %1780 = vmatmul.bf16.gmra.mxu0 %v660
        %v1781 = vpop.f32.mrf.mxu0
        %v1782 = vadd.f32 %v1733, %v1781
        %v1783 = vpop.f32.mrf.mxu0
        %v1784 = vadd.f32 %v1735, %v1783
        %1785 = vmatmul.bf16.gmra.mxu0 %v667
        %v1786 = vpop.f32.mrf.mxu0
        %v1787 = vadd.f32 %v1738, %v1786
        %v1788 = vpop.f32.mrf.mxu0
        %v1789 = vadd.f32 %v1740, %v1788
        %1790 = vmatmul.bf16.gmra.mxu0 %v674
        %v1791 = vpop.f32.mrf.mxu0
        %v1792 = vadd.f32 %v1743, %v1791
        %v1793 = vpop.f32.mrf.mxu0
        %v1794 = vadd.f32 %v1745, %v1793
        %1795 = vmatmul.bf16.gmra.mxu0 %v681
        %v1796 = vpop.f32.mrf.mxu0
        %v1797 = vadd.f32 %v1748, %v1796
        %v1798 = vpop.f32.mrf.mxu0
        %v1799 = vadd.f32 %v1750, %v1798
        %1800 = vmatmul.bf16.gmra.mxu0 %v688
        %v1801 = vpop.f32.mrf.mxu0
        %v1802 = vadd.f32 %v1753, %v1801
        %v1803 = vpop.f32.mrf.mxu0
        %v1804 = vadd.f32 %v1755, %v1803
        %1805 = vmatmul.bf16.gmra.mxu0 %v695
        %v1806 = vpop.f32.mrf.mxu0
        %v1807 = vadd.f32 %v1758, %v1806
        %v1808 = vpop.f32.mrf.mxu0
        %v1809 = vadd.f32 %v1760, %v1808
        %1810 = vmatmul.bf16.gmra.mxu0 %v702
        %v1811 = vpop.f32.mrf.mxu0
        %v1812 = vadd.f32 %v1763, %v1811
        %v1813 = vpop.f32.mrf.mxu0
        %v1814 = vadd.f32 %v1765, %v1813
        %1815 = vdwg.mxu0
        %1816 = vmatpush.bf16.msra.mxu0 %v1168
        %1817 = vmatpush.bf16.msra.mxu0 %v1166
        %1818 = vmatpush.bf16.msra.mxu0 %v1164
        %1819 = vmatpush.bf16.msra.mxu0 %v1162
        %1820 = vmatpush.bf16.msra.mxu0 %v1160
        %1821 = vmatpush.bf16.msra.mxu0 %v1158
        %1822 = vmatpush.bf16.msra.mxu0 %v1156
        %1823 = vmatpush.bf16.msra.mxu0 %v1154
        %1824 = vmatmul.bf16.gmra.mxu0 %v654
        %v1825 = vpop.f32.mrf.mxu0
        %v1826 = vadd.f32 %v1777, %v1825
        %v1827 = vpop.f32.mrf.mxu0
        %v1828 = vadd.f32 %v1779, %v1827
        %1829 = vmatmul.bf16.gmra.mxu0 %v661
        %v1830 = vpop.f32.mrf.mxu0
        %v1831 = vadd.f32 %v1782, %v1830
        %v1832 = vpop.f32.mrf.mxu0
        %v1833 = vadd.f32 %v1784, %v1832
        %1834 = vmatmul.bf16.gmra.mxu0 %v668
        %v1835 = vpop.f32.mrf.mxu0
        %v1836 = vadd.f32 %v1787, %v1835
        %v1837 = vpop.f32.mrf.mxu0
        %v1838 = vadd.f32 %v1789, %v1837
        %1839 = vmatmul.bf16.gmra.mxu0 %v675
        %v1840 = vpop.f32.mrf.mxu0
        %v1841 = vadd.f32 %v1792, %v1840
        %v1842 = vpop.f32.mrf.mxu0
        %v1843 = vadd.f32 %v1794, %v1842
        %1844 = vmatmul.bf16.gmra.mxu0 %v682
        %v1845 = vpop.f32.mrf.mxu0
        %v1846 = vadd.f32 %v1797, %v1845
        %v1847 = vpop.f32.mrf.mxu0
        %v1848 = vadd.f32 %v1799, %v1847
        %1849 = vmatmul.bf16.gmra.mxu0 %v689
        %v1850 = vpop.f32.mrf.mxu0
        %v1851 = vadd.f32 %v1802, %v1850
        %v1852 = vpop.f32.mrf.mxu0
        %v1853 = vadd.f32 %v1804, %v1852
        %1854 = vmatmul.bf16.gmra.mxu0 %v696
        %v1855 = vpop.f32.mrf.mxu0
        %v1856 = vadd.f32 %v1807, %v1855
        %v1857 = vpop.f32.mrf.mxu0
        %v1858 = vadd.f32 %v1809, %v1857
        %1859 = vmatmul.bf16.gmra.mxu0 %v703
        %v1860 = vpop.f32.mrf.mxu0
        %v1861 = vadd.f32 %v1812, %v1860
        %v1862 = vpop.f32.mrf.mxu0
        %v1863 = vadd.f32 %v1814, %v1862
        %1864 = vdwg.mxu0
        %1865 = vmatpush.bf16.msra.mxu0 %v1184
        %1866 = vmatpush.bf16.msra.mxu0 %v1182
        %1867 = vmatpush.bf16.msra.mxu0 %v1180
        %1868 = vmatpush.bf16.msra.mxu0 %v1178
        %1869 = vmatpush.bf16.msra.mxu0 %v1176
        %1870 = vmatpush.bf16.msra.mxu0 %v1174
        %1871 = vmatpush.bf16.msra.mxu0 %v1172
        %1872 = vmatpush.bf16.msra.mxu0 %v1170
        %1873 = vmatmul.bf16.gmra.mxu0 %v655
        %v1874 = vpop.f32.mrf.mxu0
        %v1875 = vadd.f32 %v1826, %v1874
        %v1876 = vpop.f32.mrf.mxu0
        %v1877 = vadd.f32 %v1828, %v1876
        %1878 = vmatmul.bf16.gmra.mxu0 %v662
        %v1879 = vpop.f32.mrf.mxu0
        %v1880 = vadd.f32 %v1831, %v1879
        %v1881 = vpop.f32.mrf.mxu0
        %v1882 = vadd.f32 %v1833, %v1881
        %1883 = vmatmul.bf16.gmra.mxu0 %v669
        %v1884 = vpop.f32.mrf.mxu0
        %v1885 = vadd.f32 %v1836, %v1884
        %v1886 = vpop.f32.mrf.mxu0
        %v1887 = vadd.f32 %v1838, %v1886
        %1888 = vmatmul.bf16.gmra.mxu0 %v676
        %v1889 = vpop.f32.mrf.mxu0
        %v1890 = vadd.f32 %v1841, %v1889
        %v1891 = vpop.f32.mrf.mxu0
        %v1892 = vadd.f32 %v1843, %v1891
        %1893 = vmatmul.bf16.gmra.mxu0 %v683
        %v1894 = vpop.f32.mrf.mxu0
        %v1895 = vadd.f32 %v1846, %v1894
        %v1896 = vpop.f32.mrf.mxu0
        %v1897 = vadd.f32 %v1848, %v1896
        %1898 = vmatmul.bf16.gmra.mxu0 %v690
        %v1899 = vpop.f32.mrf.mxu0
        %v1900 = vadd.f32 %v1851, %v1899
        %v1901 = vpop.f32.mrf.mxu0
        %v1902 = vadd.f32 %v1853, %v1901
        %1903 = vmatmul.bf16.gmra.mxu0 %v697
        %v1904 = vpop.f32.mrf.mxu0
        %v1905 = vadd.f32 %v1856, %v1904
        %v1906 = vpop.f32.mrf.mxu0
        %v1907 = vadd.f32 %v1858, %v1906
        %1908 = vmatmul.bf16.gmra.mxu0 %v704
        %v1909 = vpop.f32.mrf.mxu0
        %v1910 = vadd.f32 %v1861, %v1909
        %v1911 = vpop.f32.mrf.mxu0
        %v1912 = vadd.f32 %v1863, %v1911
        %1913 = vdwg.mxu0
        %1914 = vmatpush.bf16.msra.mxu0 %v1200
        %1915 = vmatpush.bf16.msra.mxu0 %v1198
        %1916 = vmatpush.bf16.msra.mxu0 %v1196
        %1917 = vmatpush.bf16.msra.mxu0 %v1194
        %1918 = vmatpush.bf16.msra.mxu0 %v1192
        %1919 = vmatpush.bf16.msra.mxu0 %v1190
        %1920 = vmatpush.bf16.msra.mxu0 %v1188
        %1921 = vmatpush.bf16.msra.mxu0 %v1186
        %1922 = vmatmul.bf16.gmra.mxu0 %v656
        %v1923 = vpop.f32.mrf.mxu0
        %v1924 = vadd.f32 %v1875, %v1923
        %v1925 = vpop.f32.mrf.mxu0
        %v1926 = vadd.f32 %v1877, %v1925
        %1927 = vmatmul.bf16.gmra.mxu0 %v663
        %v1928 = vpop.f32.mrf.mxu0
        %v1929 = vadd.f32 %v1880, %v1928
        %v1930 = vpop.f32.mrf.mxu0
        %v1931 = vadd.f32 %v1882, %v1930
        %1932 = vmatmul.bf16.gmra.mxu0 %v670
        %v1933 = vpop.f32.mrf.mxu0
        %v1934 = vadd.f32 %v1885, %v1933
        %v1935 = vpop.f32.mrf.mxu0
        %v1936 = vadd.f32 %v1887, %v1935
        %1937 = vmatmul.bf16.gmra.mxu0 %v677
        %v1938 = vpop.f32.mrf.mxu0
        %v1939 = vadd.f32 %v1890, %v1938
        %v1940 = vpop.f32.mrf.mxu0
        %v1941 = vadd.f32 %v1892, %v1940
        %1942 = vmatmul.bf16.gmra.mxu0 %v684
        %v1943 = vpop.f32.mrf.mxu0
        %v1944 = vadd.f32 %v1895, %v1943
        %v1945 = vpop.f32.mrf.mxu0
        %v1946 = vadd.f32 %v1897, %v1945
        %1947 = vmatmul.bf16.gmra.mxu0 %v691
        %v1948 = vpop.f32.mrf.mxu0
        %v1949 = vadd.f32 %v1900, %v1948
        %v1950 = vpop.f32.mrf.mxu0
        %v1951 = vadd.f32 %v1902, %v1950
        %1952 = vmatmul.bf16.gmra.mxu0 %v698
        %v1953 = vpop.f32.mrf.mxu0
        %v1954 = vadd.f32 %v1905, %v1953
        %v1955 = vpop.f32.mrf.mxu0
        %v1956 = vadd.f32 %v1907, %v1955
        %1957 = vmatmul.bf16.gmra.mxu0 %v705
        %v1958 = vpop.f32.mrf.mxu0
        %v1959 = vadd.f32 %v1910, %v1958
        %v1960 = vpop.f32.mrf.mxu0
        %v1961 = vadd.f32 %v1912, %v1960
        %1962 = vdwg.mxu0
        %1963 = vmatpush.bf16.msra.mxu0 0
        %1964 = vmatpush.bf16.msra.mxu0 0
        %1965 = vmatpush.bf16.msra.mxu0 0
        %1966 = vmatpush.bf16.msra.mxu0 0
        %1967 = vmatpush.bf16.msra.mxu0 0
        %1968 = vmatpush.bf16.msra.mxu0 0
        %1969 = vmatpush.bf16.msra.mxu0 0
        %1970 = vmatpush.bf16.msra.mxu0 %v1202
        %1971 = vmatmul.bf16.gmra.mxu0 %v1303
        %v1972 = vpop.f32.mrf.mxu0
        %v1973 = vadd.f32 %v1924, %v1972
        %v1974 = vpop.f32.mrf.mxu0
        %v1975 = vadd.f32 %v1926, %v1974
        %1976 = vmatmul.bf16.gmra.mxu0 %v1306
        %v1977 = vpop.f32.mrf.mxu0
        %v1978 = vadd.f32 %v1929, %v1977
        %v1979 = vpop.f32.mrf.mxu0
        %v1980 = vadd.f32 %v1931, %v1979
        %1981 = vmatmul.bf16.gmra.mxu0 %v1309
        %v1982 = vpop.f32.mrf.mxu0
        %v1983 = vadd.f32 %v1934, %v1982
        %v1984 = vpop.f32.mrf.mxu0
        %v1985 = vadd.f32 %v1936, %v1984
        %1986 = vmatmul.bf16.gmra.mxu0 %v1312
        %v1987 = vpop.f32.mrf.mxu0
        %v1988 = vadd.f32 %v1939, %v1987
        %v1989 = vpop.f32.mrf.mxu0
        %v1990 = vadd.f32 %v1941, %v1989
        %1991 = vmatmul.bf16.gmra.mxu0 %v1315
        %v1992 = vpop.f32.mrf.mxu0
        %v1993 = vadd.f32 %v1944, %v1992
        %v1994 = vpop.f32.mrf.mxu0
        %v1995 = vadd.f32 %v1946, %v1994
        %1996 = vmatmul.bf16.gmra.mxu0 %v1318
        %v1997 = vpop.f32.mrf.mxu0
        %v1998 = vadd.f32 %v1949, %v1997
        %v1999 = vpop.f32.mrf.mxu0
        %v2000 = vadd.f32 %v1951, %v1999
        %2001 = vmatmul.bf16.gmra.mxu0 %v1321
        %v2002 = vpop.f32.mrf.mxu0
        %v2003 = vadd.f32 %v1954, %v2002
        %v2004 = vpop.f32.mrf.mxu0
        %v2005 = vadd.f32 %v1956, %v2004
        %2006 = vmatmul.bf16.gmra.mxu0 %v1324
        %v2007 = vpop.f32.mrf.mxu0
        %v2008 = vadd.f32 %v1959, %v2007
        %v2009 = vpop.f32.mrf.mxu0
        %v2010 = vadd.f32 %v1961, %v2009
        %2011 = vdwg.mxu0
        %v2012 = vld [vmem:[%s3] sm:$0x3]
        %v2014 = vperm.slane %v2012, 0
        %v2015 = vperm.slane %v2012, 1
        %v2018 = vmul.f32 %v1630, %v2014
        %v2019 = vmul.f32 %v1973, %v2015
        %v2020 = vmul.f32 %v1632, %v2014
        %v2021 = vmul.f32 %v1975, %v2015
        %v2022 = vmul.f32 %v1635, %v2014
        %v2023 = vmul.f32 %v1978, %v2015
        %v2024 = vmul.f32 %v1637, %v2014
        %v2025 = vmul.f32 %v1980, %v2015
        %v2026 = vmul.f32 %v1640, %v2014
        %v2027 = vmul.f32 %v1983, %v2015
        %v2028 = vmul.f32 %v1642, %v2014
        %v2029 = vmul.f32 %v1985, %v2015
        %v2030 = vmul.f32 %v1645, %v2014
        %v2031 = vmul.f32 %v1988, %v2015
        %v2032 = vmul.f32 %v1647, %v2014
        %v2033 = vmul.f32 %v1990, %v2015
        %v2034 = vmul.f32 %v1650, %v2014
        %v2035 = vmul.f32 %v1993, %v2015
        %v2036 = vmul.f32 %v1652, %v2014
        %v2037 = vmul.f32 %v1995, %v2015
        %v2038 = vmul.f32 %v1655, %v2014
        %v2039 = vmul.f32 %v1998, %v2015
        %v2040 = vmul.f32 %v1657, %v2014
        %v2041 = vmul.f32 %v2000, %v2015
        %v2042 = vmul.f32 %v1660, %v2014
        %v2043 = vmul.f32 %v2003, %v2015
        %v2044 = vmul.f32 %v1662, %v2014
        %v2045 = vmul.f32 %v2005, %v2015
        %v2046 = vmul.f32 %v1665, %v2014
        %v2047 = vmul.f32 %v2008, %v2015
        %v2048 = vmul.f32 %v1667, %v2014
        %v2049 = vmul.f32 %v2010, %v2015
        %v2050 = vld [vmem:[%s4] sm:$0x3]
        %v2052 = vperm.slane %v2050, 0
        %v2053 = vperm.slane %v2050, 1
        %v2056 = vadd.f32 %v2018, %v2052
        %v2057 = vadd.f32 %v2019, %v2053
        %v2058 = vadd.f32 %v2020, %v2052
        %v2059 = vadd.f32 %v2021, %v2053
        %v2060 = vadd.f32 %v2022, %v2052
        %v2061 = vadd.f32 %v2023, %v2053
        %v2062 = vadd.f32 %v2024, %v2052
        %v2063 = vadd.f32 %v2025, %v2053
        %v2064 = vadd.f32 %v2026, %v2052
        %v2065 = vadd.f32 %v2027, %v2053
        %v2066 = vadd.f32 %v2028, %v2052
        %v2067 = vadd.f32 %v2029, %v2053
        %v2068 = vadd.f32 %v2030, %v2052
        %v2069 = vadd.f32 %v2031, %v2053
        %v2070 = vadd.f32 %v2032, %v2052
        %v2071 = vadd.f32 %v2033, %v2053
        %v2072 = vadd.f32 %v2034, %v2052
        %v2073 = vadd.f32 %v2035, %v2053
        %v2074 = vadd.f32 %v2036, %v2052
        %v2075 = vadd.f32 %v2037, %v2053
        %v2076 = vadd.f32 %v2038, %v2052
        %v2077 = vadd.f32 %v2039, %v2053
        %v2078 = vadd.f32 %v2040, %v2052
        %v2079 = vadd.f32 %v2041, %v2053
        %v2080 = vadd.f32 %v2042, %v2052
        %v2081 = vadd.f32 %v2043, %v2053
        %v2082 = vadd.f32 %v2044, %v2052
        %v2083 = vadd.f32 %v2045, %v2053
        %v2084 = vadd.f32 %v2046, %v2052
        %v2085 = vadd.f32 %v2047, %v2053
        %v2086 = vadd.f32 %v2048, %v2052
        %v2087 = vadd.f32 %v2049, %v2053
        %v2088 = vmax.f32 %v2056, 0.0
        %v2089 = vmax.f32 %v2057, 0.0
        %v2090 = vmax.f32 %v2058, 0.0
        %v2091 = vmax.f32 %v2059, 0.0
        %v2092 = vmax.f32 %v2060, 0.0
        %v2093 = vmax.f32 %v2061, 0.0
        %v2094 = vmax.f32 %v2062, 0.0
        %v2095 = vmax.f32 %v2063, 0.0
        %v2096 = vmax.f32 %v2064, 0.0
        %v2097 = vmax.f32 %v2065, 0.0
        %v2098 = vmax.f32 %v2066, 0.0
        %v2099 = vmax.f32 %v2067, 0.0
        %v2100 = vmax.f32 %v2068, 0.0
        %v2101 = vmax.f32 %v2069, 0.0
        %v2102 = vmax.f32 %v2070, 0.0
        %v2103 = vmax.f32 %v2071, 0.0
        %v2104 = vmax.f32 %v2072, 0.0
        %v2105 = vmax.f32 %v2073, 0.0
        %v2106 = vmax.f32 %v2074, 0.0
        %v2107 = vmax.f32 %v2075, 0.0
        %v2108 = vmax.f32 %v2076, 0.0
        %v2109 = vmax.f32 %v2077, 0.0
        %v2110 = vmax.f32 %v2078, 0.0
        %v2111 = vmax.f32 %v2079, 0.0
        %v2112 = vmax.f32 %v2080, 0.0
        %v2113 = vmax.f32 %v2081, 0.0
        %v2114 = vmax.f32 %v2082, 0.0
        %v2115 = vmax.f32 %v2083, 0.0
        %v2116 = vmax.f32 %v2084, 0.0
        %v2117 = vmax.f32 %v2085, 0.0
        %v2118 = vmax.f32 %v2086, 0.0
        %v2119 = vmax.f32 %v2087, 0.0
        %v2120 = vpack.c.bf16 %v2090, %v2088
        %v2121 = vpack.c.bf16 %v2091, %v2089
        %v2122 = vpack.c.bf16 %v2094, %v2092
        %v2123 = vpack.c.bf16 %v2095, %v2093
        %v2124 = vpack.c.bf16 %v2098, %v2096
        %v2125 = vpack.c.bf16 %v2099, %v2097
        %v2126 = vpack.c.bf16 %v2102, %v2100
        %v2127 = vpack.c.bf16 %v2103, %v2101
        %v2128 = vpack.c.bf16 %v2106, %v2104
        %v2129 = vpack.c.bf16 %v2107, %v2105
        %v2130 = vpack.c.bf16 %v2110, %v2108
        %v2131 = vpack.c.bf16 %v2111, %v2109
        %v2132 = vpack.c.bf16 %v2114, %v2112
        %v2133 = vpack.c.bf16 %v2115, %v2113
        %v2134 = vpack.c.bf16 %v2118, %v2116
        %v2135 = vpack.c.bf16 %v2119, %v2117
        %v2136 = vld [vmem:[%s5] sm:$0xf]
        %v2137 = vld [vmem:[%s5 + $0x4] sm:$0xf]
        %v2138 = vld [vmem:[%s5 + $0x8] sm:$0xf]
        %v2139 = vld [vmem:[%s5 + $0xc] sm:$0xf]
        %v2140 = vld [vmem:[%s5 + $0x10] sm:$0xf]
        %v2141 = vld [vmem:[%s5 + $0x14] sm:$0xf]
        %v2142 = vld [vmem:[%s5 + $0x18] sm:$0xf]
        %v2143 = vld [vmem:[%s5 + $0x1c] sm:$0xf]
        %v2144 = vld [vmem:[%s5 + $0x20] sm:$0xf]
        %v2145 = vld [vmem:[%s5 + $0x24] sm:$0xf]
        %v2146 = vld [vmem:[%s5 + $0x28] sm:$0xf]
        %v2147 = vld [vmem:[%s5 + $0x2c] sm:$0xf]
        %v2148 = vld [vmem:[%s5 + $0x30] sm:$0xf]
        %v2149 = vld [vmem:[%s5 + $0x34] sm:$0xf]
        %v2150 = vld [vmem:[%s5 + $0x38] sm:$0xf]
        %v2151 = vld [vmem:[%s5 + $0x3c] sm:$0xf]
        %v2152 = vld [vmem:[%s5 + $0x40] sm:$0xf]
        %v2153 = vld [vmem:[%s5 + $0x44] sm:$0xf]
        %v2154 = vld [vmem:[%s5 + $0x48] sm:$0xf]
        %v2155 = vld [vmem:[%s5 + $0x4c] sm:$0xf]
        %v2156 = vld [vmem:[%s5 + $0x50] sm:$0xf]
        %v2157 = vld [vmem:[%s5 + $0x54] sm:$0xf]
        %v2158 = vld [vmem:[%s5 + $0x58] sm:$0xf]
        %v2159 = vld [vmem:[%s5 + $0x5c] sm:$0xf]
        %v2160 = vld [vmem:[%s5 + $0x60] sm:$0xf]
        %v2161 = vld [vmem:[%s5 + $0x64] sm:$0xf]
        %v2162 = vld [vmem:[%s5 + $0x68] sm:$0xf]
        %v2163 = vld [vmem:[%s5 + $0x6c] sm:$0xf]
        %v2164 = vld [vmem:[%s5 + $0x70] sm:$0xf]
        %v2165 = vld [vmem:[%s5 + $0x74] sm:$0xf]
        %v2166 = vld [vmem:[%s5 + $0x78] sm:$0xf]
        %v2167 = vld [vmem:[%s5 + $0x7c] sm:$0xf]
        %v2168 = vld [vmem:[%s6] sm:$0x1]
        %v2170 = vperm.slane %v2168, 0
        %v2204 = vunpack.c.l.b16 %v2136
        %v2205 = vunpack.c.l.b16 %v2137
        %v2206 = vunpack.c.l.b16 %v2138
        %v2207 = vunpack.c.l.b16 %v2139
        %v2208 = vunpack.c.l.b16 %v2140
        %v2209 = vunpack.c.l.b16 %v2141
        %v2210 = vunpack.c.l.b16 %v2142
        %v2211 = vunpack.c.l.b16 %v2143
        %v2212 = vunpack.c.l.b16 %v2144
        %v2213 = vunpack.c.l.b16 %v2145
        %v2214 = vunpack.c.l.b16 %v2146
        %v2215 = vunpack.c.l.b16 %v2147
        %v2216 = vunpack.c.l.b16 %v2148
        %v2217 = vunpack.c.l.b16 %v2149
        %v2218 = vunpack.c.l.b16 %v2150
        %v2219 = vunpack.c.l.b16 %v2151
        %v2220 = vunpack.c.l.b16 %v2152
        %v2221 = vunpack.c.l.b16 %v2153
        %v2222 = vunpack.c.l.b16 %v2154
        %v2223 = vunpack.c.l.b16 %v2155
        %v2224 = vunpack.c.l.b16 %v2156
        %v2225 = vunpack.c.l.b16 %v2157
        %v2226 = vunpack.c.l.b16 %v2158
        %v2227 = vunpack.c.l.b16 %v2159
        %v2228 = vunpack.c.l.b16 %v2160
        %v2229 = vunpack.c.l.b16 %v2161
        %v2230 = vunpack.c.l.b16 %v2162
        %v2231 = vunpack.c.l.b16 %v2163
        %v2232 = vunpack.c.l.b16 %v2164
        %v2233 = vunpack.c.l.b16 %v2165
        %v2234 = vunpack.c.l.b16 %v2166
        %v2235 = vunpack.c.l.b16 %v2167
        %v2236 = vpack.c.b16 %v2205, %v2204
        %v2237 = vpack.c.b16 %v2207, %v2206
        %v2238 = vpack.c.b16 %v2209, %v2208
        %v2239 = vpack.c.b16 %v2211, %v2210
        %v2240 = vpack.c.b16 %v2213, %v2212
        %v2241 = vpack.c.b16 %v2215, %v2214
        %v2242 = vpack.c.b16 %v2217, %v2216
        %v2243 = vpack.c.b16 %v2219, %v2218
        %v2244 = vpack.c.b16 %v2221, %v2220
        %v2245 = vpack.c.b16 %v2223, %v2222
        %v2246 = vpack.c.b16 %v2225, %v2224
        %v2247 = vpack.c.b16 %v2227, %v2226
        %v2248 = vpack.c.b16 %v2229, %v2228
        %v2249 = vpack.c.b16 %v2231, %v2230
        %v2250 = vpack.c.b16 %v2233, %v2232
        %v2251 = vpack.c.b16 %v2235, %v2234
        %2268 = vmatpush.bf16.msra.mxu0 %v2243
        %2269 = vmatpush.bf16.msra.mxu0 %v2242
        %2270 = vmatpush.bf16.msra.mxu0 %v2241
        %2271 = vmatpush.bf16.msra.mxu0 %v2240
        %2272 = vmatpush.bf16.msra.mxu0 %v2239
        %2273 = vmatpush.bf16.msra.mxu0 %v2238
        %2274 = vmatpush.bf16.msra.mxu0 %v2237
        %2275 = vmatpush.bf16.msra.mxu0 %v2236
        %2276 = vmatmul.bf16.gmra.mxu0 %v2120
        %v2277 = vpop.f32.mrf.mxu0
        %v2278 = vadd.f32 %v2170, %v2277
        %v2279 = vpop.f32.mrf.mxu0
        %v2280 = vadd.f32 %v2170, %v2279
        %2281 = vmatmul.bf16.gmra.mxu0 %v2122
        %v2282 = vpop.f32.mrf.mxu0
        %v2283 = vadd.f32 %v2170, %v2282
        %v2284 = vpop.f32.mrf.mxu0
        %v2285 = vadd.f32 %v2170, %v2284
        %2286 = vmatmul.bf16.gmra.mxu0 %v2124
        %v2287 = vpop.f32.mrf.mxu0
        %v2288 = vadd.f32 %v2170, %v2287
        %v2289 = vpop.f32.mrf.mxu0
        %v2290 = vadd.f32 %v2170, %v2289
        %2291 = vmatmul.bf16.gmra.mxu0 %v2126
        %v2292 = vpop.f32.mrf.mxu0
        %v2293 = vadd.f32 %v2170, %v2292
        %v2294 = vpop.f32.mrf.mxu0
        %v2295 = vadd.f32 %v2170, %v2294
        %2296 = vmatmul.bf16.gmra.mxu0 %v2128
        %v2297 = vpop.f32.mrf.mxu0
        %v2298 = vadd.f32 %v2170, %v2297
        %v2299 = vpop.f32.mrf.mxu0
        %v2300 = vadd.f32 %v2170, %v2299
        %2301 = vmatmul.bf16.gmra.mxu0 %v2130
        %v2302 = vpop.f32.mrf.mxu0
        %v2303 = vadd.f32 %v2170, %v2302
        %v2304 = vpop.f32.mrf.mxu0
        %v2305 = vadd.f32 %v2170, %v2304
        %2306 = vmatmul.bf16.gmra.mxu0 %v2132
        %v2307 = vpop.f32.mrf.mxu0
        %v2308 = vadd.f32 %v2170, %v2307
        %v2309 = vpop.f32.mrf.mxu0
        %v2310 = vadd.f32 %v2170, %v2309
        %2311 = vmatmul.bf16.gmra.mxu0 %v2134
        %v2312 = vpop.f32.mrf.mxu0
        %v2313 = vadd.f32 %v2170, %v2312
        %v2314 = vpop.f32.mrf.mxu0
        %v2315 = vadd.f32 %v2170, %v2314
        %2316 = vdwg.mxu0
        %2317 = vmatpush.bf16.msra.mxu0 %v2251
        %2318 = vmatpush.bf16.msra.mxu0 %v2250
        %2319 = vmatpush.bf16.msra.mxu0 %v2249
        %2320 = vmatpush.bf16.msra.mxu0 %v2248
        %2321 = vmatpush.bf16.msra.mxu0 %v2247
        %2322 = vmatpush.bf16.msra.mxu0 %v2246
        %2323 = vmatpush.bf16.msra.mxu0 %v2245
        %2324 = vmatpush.bf16.msra.mxu0 %v2244
        %2325 = vmatmul.bf16.gmra.mxu0 %v2121
        %v2326 = vpop.f32.mrf.mxu0
        %v2327 = vadd.f32 %v2278, %v2326
        %v2328 = vpop.f32.mrf.mxu0
        %v2329 = vadd.f32 %v2280, %v2328
        %2330 = vmatmul.bf16.gmra.mxu0 %v2123
        %v2331 = vpop.f32.mrf.mxu0
        %v2332 = vadd.f32 %v2283, %v2331
        %v2333 = vpop.f32.mrf.mxu0
        %v2334 = vadd.f32 %v2285, %v2333
        %2335 = vmatmul.bf16.gmra.mxu0 %v2125
        %v2336 = vpop.f32.mrf.mxu0
        %v2337 = vadd.f32 %v2288, %v2336
        %v2338 = vpop.f32.mrf.mxu0
        %v2339 = vadd.f32 %v2290, %v2338
        %2340 = vmatmul.bf16.gmra.mxu0 %v2127
        %v2341 = vpop.f32.mrf.mxu0
        %v2342 = vadd.f32 %v2293, %v2341
        %v2343 = vpop.f32.mrf.mxu0
        %v2344 = vadd.f32 %v2295, %v2343
        %2345 = vmatmul.bf16.gmra.mxu0 %v2129
        %v2346 = vpop.f32.mrf.mxu0
        %v2347 = vadd.f32 %v2298, %v2346
        %v2348 = vpop.f32.mrf.mxu0
        %v2349 = vadd.f32 %v2300, %v2348
        %2350 = vmatmul.bf16.gmra.mxu0 %v2131
        %v2351 = vpop.f32.mrf.mxu0
        %v2352 = vadd.f32 %v2303, %v2351
        %v2353 = vpop.f32.mrf.mxu0
        %v2354 = vadd.f32 %v2305, %v2353
        %2355 = vmatmul.bf16.gmra.mxu0 %v2133
        %v2356 = vpop.f32.mrf.mxu0
        %v2357 = vadd.f32 %v2308, %v2356
        %v2358 = vpop.f32.mrf.mxu0
        %v2359 = vadd.f32 %v2310, %v2358
        %2360 = vmatmul.bf16.gmra.mxu0 %v2135
        %v2361 = vpop.f32.mrf.mxu0
        %v2362 = vadd.f32 %v2313, %v2361
        %v2363 = vpop.f32.mrf.mxu0
        %v2364 = vadd.f32 %v2315, %v2363
        %2365 = vdwg.mxu0
        %v2366 = vld [vmem:[%s7] sm:$0x1]
        %v2368 = vperm.slane %v2366, 0
        %v2370 = vmul.f32 %v2327, %v2368
        %v2371 = vmul.f32 %v2329, %v2368
        %v2372 = vmul.f32 %v2332, %v2368
        %v2373 = vmul.f32 %v2334, %v2368
        %v2374 = vmul.f32 %v2337, %v2368
        %v2375 = vmul.f32 %v2339, %v2368
        %v2376 = vmul.f32 %v2342, %v2368
        %v2377 = vmul.f32 %v2344, %v2368
        %v2378 = vmul.f32 %v2347, %v2368
        %v2379 = vmul.f32 %v2349, %v2368
        %v2380 = vmul.f32 %v2352, %v2368
        %v2381 = vmul.f32 %v2354, %v2368
        %v2382 = vmul.f32 %v2357, %v2368
        %v2383 = vmul.f32 %v2359, %v2368
        %v2384 = vmul.f32 %v2362, %v2368
        %v2385 = vmul.f32 %v2364, %v2368
        %v2386 = vld [vmem:[%s8] sm:$0x1]
        %v2388 = vperm.slane %v2386, 0
        %v2390 = vadd.f32 %v2370, %v2388
        %v2391 = vadd.f32 %v2371, %v2388
        %v2392 = vadd.f32 %v2372, %v2388
        %v2393 = vadd.f32 %v2373, %v2388
        %v2394 = vadd.f32 %v2374, %v2388
        %v2395 = vadd.f32 %v2375, %v2388
        %v2396 = vadd.f32 %v2376, %v2388
        %v2397 = vadd.f32 %v2377, %v2388
        %v2398 = vadd.f32 %v2378, %v2388
        %v2399 = vadd.f32 %v2379, %v2388
        %v2400 = vadd.f32 %v2380, %v2388
        %v2401 = vadd.f32 %v2381, %v2388
        %v2402 = vadd.f32 %v2382, %v2388
        %v2403 = vadd.f32 %v2383, %v2388
        %v2404 = vadd.f32 %v2384, %v2388
        %v2405 = vadd.f32 %v2385, %v2388
        %v2406 = vmax.f32 %v2390, 0.0
        %v2407 = vmax.f32 %v2391, 0.0
        %v2408 = vmax.f32 %v2392, 0.0
        %v2409 = vmax.f32 %v2393, 0.0
        %v2410 = vmax.f32 %v2394, 0.0
        %v2411 = vmax.f32 %v2395, 0.0
        %v2412 = vmax.f32 %v2396, 0.0
        %v2413 = vmax.f32 %v2397, 0.0
        %v2414 = vmax.f32 %v2398, 0.0
        %v2415 = vmax.f32 %v2399, 0.0
        %v2416 = vmax.f32 %v2400, 0.0
        %v2417 = vmax.f32 %v2401, 0.0
        %v2418 = vmax.f32 %v2402, 0.0
        %v2419 = vmax.f32 %v2403, 0.0
        %v2420 = vmax.f32 %v2404, 0.0
        %v2421 = vmax.f32 %v2405, 0.0
        %v2422 = vpack.c.bf16 %v2407, %v2406
        %v2423 = vpack.c.bf16 %v2409, %v2408
        %v2424 = vpack.c.bf16 %v2411, %v2410
        %v2425 = vpack.c.bf16 %v2413, %v2412
        %v2426 = vpack.c.bf16 %v2415, %v2414
        %v2427 = vpack.c.bf16 %v2417, %v2416
        %v2428 = vpack.c.bf16 %v2419, %v2418
        %v2429 = vpack.c.bf16 %v2421, %v2420
        %v2430 = vld [vmem:[%s9] sm:$0xff]
        %v2431 = vld [vmem:[%s9 + $0x8] sm:$0xff]
        %v2432 = vld [vmem:[%s9 + $0x10] sm:$0xff]
        %v2433 = vld [vmem:[%s9 + $0x18] sm:$0xff]
        %v2434 = vld [vmem:[%s9 + $0x20] sm:$0xff]
        %v2435 = vld [vmem:[%s9 + $0x28] sm:$0xff]
        %v2436 = vld [vmem:[%s9 + $0x30] sm:$0xff]
        %v2437 = vld [vmem:[%s9 + $0x38] sm:$0xff]
        %v2438 = vld [vmem:[%s9 + $0x40] sm:$0xff]
        %v2439 = vld [vmem:[%s9 + $0x48] sm:$0xff]
        %v2440 = vld [vmem:[%s9 + $0x50] sm:$0xff]
        %v2441 = vld [vmem:[%s9 + $0x58] sm:$0xff]
        %v2442 = vld [vmem:[%s9 + $0x60] sm:$0xff]
        %v2443 = vld [vmem:[%s9 + $0x68] sm:$0xff]
        %v2444 = vld [vmem:[%s9 + $0x70] sm:$0xff]
        %v2445 = vld [vmem:[%s9 + $0x78] sm:$0xff]
        %v2446 = vld [vmem:[%s10] sm:$0x3]
        %v2448 = vperm.slane %v2446, 0
        %v2449 = vperm.slane %v2446, 1
        %v2468 = vunpack.c.l.b16 %v2430
        %v2469 = vunpack.c.h.b16 %v2430
        %v2470 = vunpack.c.l.b16 %v2431
        %v2471 = vunpack.c.h.b16 %v2431
        %v2472 = vunpack.c.l.b16 %v2432
        %v2473 = vunpack.c.h.b16 %v2432
        %v2474 = vunpack.c.l.b16 %v2433
        %v2475 = vunpack.c.h.b16 %v2433
        %v2476 = vunpack.c.l.b16 %v2434
        %v2477 = vunpack.c.h.b16 %v2434
        %v2478 = vunpack.c.l.b16 %v2435
        %v2479 = vunpack.c.h.b16 %v2435
        %v2480 = vunpack.c.l.b16 %v2436
        %v2481 = vunpack.c.h.b16 %v2436
        %v2482 = vunpack.c.l.b16 %v2437
        %v2483 = vunpack.c.h.b16 %v2437
        %v2484 = vunpack.c.l.b16 %v2438
        %v2485 = vunpack.c.h.b16 %v2438
        %v2486 = vunpack.c.l.b16 %v2439
        %v2487 = vunpack.c.h.b16 %v2439
        %v2488 = vunpack.c.l.b16 %v2440
        %v2489 = vunpack.c.h.b16 %v2440
        %v2490 = vunpack.c.l.b16 %v2441
        %v2491 = vunpack.c.h.b16 %v2441
        %v2492 = vunpack.c.l.b16 %v2442
        %v2493 = vunpack.c.h.b16 %v2442
        %v2494 = vunpack.c.l.b16 %v2443
        %v2495 = vunpack.c.h.b16 %v2443
        %v2496 = vunpack.c.l.b16 %v2444
        %v2497 = vunpack.c.h.b16 %v2444
        %v2498 = vunpack.c.l.b16 %v2445
        %v2499 = vunpack.c.h.b16 %v2445
        %v2500 = vpack.c.b16 %v2470, %v2468
        %v2501 = vpack.c.b16 %v2471, %v2469
        %v2502 = vpack.c.b16 %v2474, %v2472
        %v2503 = vpack.c.b16 %v2475, %v2473
        %v2504 = vpack.c.b16 %v2478, %v2476
        %v2505 = vpack.c.b16 %v2479, %v2477
        %v2506 = vpack.c.b16 %v2482, %v2480
        %v2507 = vpack.c.b16 %v2483, %v2481
        %v2508 = vpack.c.b16 %v2486, %v2484
        %v2509 = vpack.c.b16 %v2487, %v2485
        %v2510 = vpack.c.b16 %v2490, %v2488
        %v2511 = vpack.c.b16 %v2491, %v2489
        %v2512 = vpack.c.b16 %v2494, %v2492
        %v2513 = vpack.c.b16 %v2495, %v2493
        %v2514 = vpack.c.b16 %v2498, %v2496
        %v2515 = vpack.c.b16 %v2499, %v2497
        %2532 = vmatpush.bf16.msra.mxu0 %v2514
        %2533 = vmatpush.bf16.msra.mxu0 %v2512
        %2534 = vmatpush.bf16.msra.mxu0 %v2510
        %2535 = vmatpush.bf16.msra.mxu0 %v2508
        %2536 = vmatpush.bf16.msra.mxu0 %v2506
        %2537 = vmatpush.bf16.msra.mxu0 %v2504
        %2538 = vmatpush.bf16.msra.mxu0 %v2502
        %2539 = vmatpush.bf16.msra.mxu0 %v2500
        %2540 = vmatmul.bf16.gmra.mxu0 %v2422
        %v2541 = vpop.f32.mrf.mxu0
        %v2542 = vadd.f32 %v2448, %v2541
        %v2543 = vpop.f32.mrf.mxu0
        %v2544 = vadd.f32 %v2448, %v2543
        %2545 = vmatmul.bf16.gmra.mxu0 %v2423
        %v2546 = vpop.f32.mrf.mxu0
        %v2547 = vadd.f32 %v2448, %v2546
        %v2548 = vpop.f32.mrf.mxu0
        %v2549 = vadd.f32 %v2448, %v2548
        %2550 = vmatmul.bf16.gmra.mxu0 %v2424
        %v2551 = vpop.f32.mrf.mxu0
        %v2552 = vadd.f32 %v2448, %v2551
        %v2553 = vpop.f32.mrf.mxu0
        %v2554 = vadd.f32 %v2448, %v2553
        %2555 = vmatmul.bf16.gmra.mxu0 %v2425
        %v2556 = vpop.f32.mrf.mxu0
        %v2557 = vadd.f32 %v2448, %v2556
        %v2558 = vpop.f32.mrf.mxu0
        %v2559 = vadd.f32 %v2448, %v2558
        %2560 = vmatmul.bf16.gmra.mxu0 %v2426
        %v2561 = vpop.f32.mrf.mxu0
        %v2562 = vadd.f32 %v2448, %v2561
        %v2563 = vpop.f32.mrf.mxu0
        %v2564 = vadd.f32 %v2448, %v2563
        %2565 = vmatmul.bf16.gmra.mxu0 %v2427
        %v2566 = vpop.f32.mrf.mxu0
        %v2567 = vadd.f32 %v2448, %v2566
        %v2568 = vpop.f32.mrf.mxu0
        %v2569 = vadd.f32 %v2448, %v2568
        %2570 = vmatmul.bf16.gmra.mxu0 %v2428
        %v2571 = vpop.f32.mrf.mxu0
        %v2572 = vadd.f32 %v2448, %v2571
        %v2573 = vpop.f32.mrf.mxu0
        %v2574 = vadd.f32 %v2448, %v2573
        %2575 = vmatmul.bf16.gmra.mxu0 %v2429
        %v2576 = vpop.f32.mrf.mxu0
        %v2577 = vadd.f32 %v2448, %v2576
        %v2578 = vpop.f32.mrf.mxu0
        %v2579 = vadd.f32 %v2448, %v2578
        %2580 = vdwg.mxu0
        %2581 = vmatpush.bf16.msra.mxu0 %v2515
        %2582 = vmatpush.bf16.msra.mxu0 %v2513
        %2583 = vmatpush.bf16.msra.mxu0 %v2511
        %2584 = vmatpush.bf16.msra.mxu0 %v2509
        %2585 = vmatpush.bf16.msra.mxu0 %v2507
        %2586 = vmatpush.bf16.msra.mxu0 %v2505
        %2587 = vmatpush.bf16.msra.mxu0 %v2503
        %2588 = vmatpush.bf16.msra.mxu0 %v2501
        %2589 = vmatmul.bf16.gmra.mxu0 %v2422
        %v2590 = vpop.f32.mrf.mxu0
        %v2591 = vadd.f32 %v2449, %v2590
        %v2592 = vpop.f32.mrf.mxu0
        %v2593 = vadd.f32 %v2449, %v2592
        %2594 = vmatmul.bf16.gmra.mxu0 %v2423
        %v2595 = vpop.f32.mrf.mxu0
        %v2596 = vadd.f32 %v2449, %v2595
        %v2597 = vpop.f32.mrf.mxu0
        %v2598 = vadd.f32 %v2449, %v2597
        %2599 = vmatmul.bf16.gmra.mxu0 %v2424
        %v2600 = vpop.f32.mrf.mxu0
        %v2601 = vadd.f32 %v2449, %v2600
        %v2602 = vpop.f32.mrf.mxu0
        %v2603 = vadd.f32 %v2449, %v2602
        %2604 = vmatmul.bf16.gmra.mxu0 %v2425
        %v2605 = vpop.f32.mrf.mxu0
        %v2606 = vadd.f32 %v2449, %v2605
        %v2607 = vpop.f32.mrf.mxu0
        %v2608 = vadd.f32 %v2449, %v2607
        %2609 = vmatmul.bf16.gmra.mxu0 %v2426
        %v2610 = vpop.f32.mrf.mxu0
        %v2611 = vadd.f32 %v2449, %v2610
        %v2612 = vpop.f32.mrf.mxu0
        %v2613 = vadd.f32 %v2449, %v2612
        %2614 = vmatmul.bf16.gmra.mxu0 %v2427
        %v2615 = vpop.f32.mrf.mxu0
        %v2616 = vadd.f32 %v2449, %v2615
        %v2617 = vpop.f32.mrf.mxu0
        %v2618 = vadd.f32 %v2449, %v2617
        %2619 = vmatmul.bf16.gmra.mxu0 %v2428
        %v2620 = vpop.f32.mrf.mxu0
        %v2621 = vadd.f32 %v2449, %v2620
        %v2622 = vpop.f32.mrf.mxu0
        %v2623 = vadd.f32 %v2449, %v2622
        %2624 = vmatmul.bf16.gmra.mxu0 %v2429
        %v2625 = vpop.f32.mrf.mxu0
        %v2626 = vadd.f32 %v2449, %v2625
        %v2627 = vpop.f32.mrf.mxu0
        %v2628 = vadd.f32 %v2449, %v2627
        %2629 = vdwg.mxu0
        %v2630 = vld [vmem:[%s11] sm:$0x3]
        %v2632 = vperm.slane %v2630, 0
        %v2633 = vperm.slane %v2630, 1
        %v2636 = vmul.f32 %v2542, %v2632
        %v2637 = vmul.f32 %v2591, %v2633
        %v2638 = vmul.f32 %v2544, %v2632
        %v2639 = vmul.f32 %v2593, %v2633
        %v2640 = vmul.f32 %v2547, %v2632
        %v2641 = vmul.f32 %v2596, %v2633
        %v2642 = vmul.f32 %v2549, %v2632
        %v2643 = vmul.f32 %v2598, %v2633
        %v2644 = vmul.f32 %v2552, %v2632
        %v2645 = vmul.f32 %v2601, %v2633
        %v2646 = vmul.f32 %v2554, %v2632
        %v2647 = vmul.f32 %v2603, %v2633
        %v2648 = vmul.f32 %v2557, %v2632
        %v2649 = vmul.f32 %v2606, %v2633
        %v2650 = vmul.f32 %v2559, %v2632
        %v2651 = vmul.f32 %v2608, %v2633
        %v2652 = vmul.f32 %v2562, %v2632
        %v2653 = vmul.f32 %v2611, %v2633
        %v2654 = vmul.f32 %v2564, %v2632
        %v2655 = vmul.f32 %v2613, %v2633
        %v2656 = vmul.f32 %v2567, %v2632
        %v2657 = vmul.f32 %v2616, %v2633
        %v2658 = vmul.f32 %v2569, %v2632
        %v2659 = vmul.f32 %v2618, %v2633
        %v2660 = vmul.f32 %v2572, %v2632
        %v2661 = vmul.f32 %v2621, %v2633
        %v2662 = vmul.f32 %v2574, %v2632
        %v2663 = vmul.f32 %v2623, %v2633
        %v2664 = vmul.f32 %v2577, %v2632
        %v2665 = vmul.f32 %v2626, %v2633
        %v2666 = vmul.f32 %v2579, %v2632
        %v2667 = vmul.f32 %v2628, %v2633
        %v2668 = vld [vmem:[%s12] sm:$0x3]
        %v2670 = vperm.slane %v2668, 0
        %v2671 = vperm.slane %v2668, 1
        %v2674 = vadd.f32 %v2636, %v2670
        %v2675 = vadd.f32 %v2637, %v2671
        %v2676 = vadd.f32 %v2638, %v2670
        %v2677 = vadd.f32 %v2639, %v2671
        %v2678 = vadd.f32 %v2640, %v2670
        %v2679 = vadd.f32 %v2641, %v2671
        %v2680 = vadd.f32 %v2642, %v2670
        %v2681 = vadd.f32 %v2643, %v2671
        %v2682 = vadd.f32 %v2644, %v2670
        %v2683 = vadd.f32 %v2645, %v2671
        %v2684 = vadd.f32 %v2646, %v2670
        %v2685 = vadd.f32 %v2647, %v2671
        %v2686 = vadd.f32 %v2648, %v2670
        %v2687 = vadd.f32 %v2649, %v2671
        %v2688 = vadd.f32 %v2650, %v2670
        %v2689 = vadd.f32 %v2651, %v2671
        %v2690 = vadd.f32 %v2652, %v2670
        %v2691 = vadd.f32 %v2653, %v2671
        %v2692 = vadd.f32 %v2654, %v2670
        %v2693 = vadd.f32 %v2655, %v2671
        %v2694 = vadd.f32 %v2656, %v2670
        %v2695 = vadd.f32 %v2657, %v2671
        %v2696 = vadd.f32 %v2658, %v2670
        %v2697 = vadd.f32 %v2659, %v2671
        %v2698 = vadd.f32 %v2660, %v2670
        %v2699 = vadd.f32 %v2661, %v2671
        %v2700 = vadd.f32 %v2662, %v2670
        %v2701 = vadd.f32 %v2663, %v2671
        %v2702 = vadd.f32 %v2664, %v2670
        %v2703 = vadd.f32 %v2665, %v2671
        %v2704 = vadd.f32 %v2666, %v2670
        %v2705 = vadd.f32 %v2667, %v2671
        %v2706 = vmax.f32 %v2674, 0.0
        %v2707 = vmax.f32 %v2675, 0.0
        %v2708 = vmax.f32 %v2676, 0.0
        %v2709 = vmax.f32 %v2677, 0.0
        %v2710 = vmax.f32 %v2678, 0.0
        %v2711 = vmax.f32 %v2679, 0.0
        %v2712 = vmax.f32 %v2680, 0.0
        %v2713 = vmax.f32 %v2681, 0.0
        %v2714 = vmax.f32 %v2682, 0.0
        %v2715 = vmax.f32 %v2683, 0.0
        %v2716 = vmax.f32 %v2684, 0.0
        %v2717 = vmax.f32 %v2685, 0.0
        %v2718 = vmax.f32 %v2686, 0.0
        %v2719 = vmax.f32 %v2687, 0.0
        %v2720 = vmax.f32 %v2688, 0.0
        %v2721 = vmax.f32 %v2689, 0.0
        %v2722 = vmax.f32 %v2690, 0.0
        %v2723 = vmax.f32 %v2691, 0.0
        %v2724 = vmax.f32 %v2692, 0.0
        %v2725 = vmax.f32 %v2693, 0.0
        %v2726 = vmax.f32 %v2694, 0.0
        %v2727 = vmax.f32 %v2695, 0.0
        %v2728 = vmax.f32 %v2696, 0.0
        %v2729 = vmax.f32 %v2697, 0.0
        %v2730 = vmax.f32 %v2698, 0.0
        %v2731 = vmax.f32 %v2699, 0.0
        %v2732 = vmax.f32 %v2700, 0.0
        %v2733 = vmax.f32 %v2701, 0.0
        %v2734 = vmax.f32 %v2702, 0.0
        %v2735 = vmax.f32 %v2703, 0.0
        %v2736 = vmax.f32 %v2704, 0.0
        %v2737 = vmax.f32 %v2705, 0.0
        %v2738 = vpack.c.bf16 %v2708, %v2706
        %v2739 = vpack.c.bf16 %v2709, %v2707
        %v2740 = vpack.c.bf16 %v2712, %v2710
        %v2741 = vpack.c.bf16 %v2713, %v2711
        %v2742 = vpack.c.bf16 %v2716, %v2714
        %v2743 = vpack.c.bf16 %v2717, %v2715
        %v2744 = vpack.c.bf16 %v2720, %v2718
        %v2745 = vpack.c.bf16 %v2721, %v2719
        %v2746 = vpack.c.bf16 %v2724, %v2722
        %v2747 = vpack.c.bf16 %v2725, %v2723
        %v2748 = vpack.c.bf16 %v2728, %v2726
        %v2749 = vpack.c.bf16 %v2729, %v2727
        %v2750 = vpack.c.bf16 %v2732, %v2730
        %v2751 = vpack.c.bf16 %v2733, %v2731
        %v2752 = vpack.c.bf16 %v2736, %v2734
        %v2753 = vpack.c.bf16 %v2737, %v2735
        %v2754 = vld [vmem:[%s13] sm:$0xf]
        %v2755 = vld [vmem:[%s13 + $0x4] sm:$0xf]
        %v2756 = vld [vmem:[%s13 + $0x8] sm:$0xf]
        %v2757 = vld [vmem:[%s13 + $0xc] sm:$0xf]
        %v2758 = vld [vmem:[%s13 + $0x10] sm:$0xf]
        %v2759 = vld [vmem:[%s13 + $0x14] sm:$0xf]
        %v2760 = vld [vmem:[%s13 + $0x18] sm:$0xf]
        %v2761 = vld [vmem:[%s13 + $0x1c] sm:$0xf]
        %v2762 = vld [vmem:[%s13 + $0x20] sm:$0xf]
        %v2763 = vld [vmem:[%s13 + $0x24] sm:$0xf]
        %v2764 = vld [vmem:[%s13 + $0x28] sm:$0xf]
        %v2765 = vld [vmem:[%s13 + $0x2c] sm:$0xf]
        %v2766 = vld [vmem:[%s13 + $0x30] sm:$0xf]
        %v2767 = vld [vmem:[%s13 + $0x34] sm:$0xf]
        %v2768 = vld [vmem:[%s13 + $0x38] sm:$0xf]
        %v2769 = vld [vmem:[%s13 + $0x3c] sm:$0xf]
        %v2770 = vld [vmem:[%s13 + $0x40] sm:$0xf]
        %v2771 = vld [vmem:[%s13 + $0x44] sm:$0xf]
        %v2772 = vld [vmem:[%s13 + $0x48] sm:$0xf]
        %v2773 = vld [vmem:[%s13 + $0x4c] sm:$0xf]
        %v2774 = vld [vmem:[%s13 + $0x50] sm:$0xf]
        %v2775 = vld [vmem:[%s13 + $0x54] sm:$0xf]
        %v2776 = vld [vmem:[%s13 + $0x58] sm:$0xf]
        %v2777 = vld [vmem:[%s13 + $0x5c] sm:$0xf]
        %v2778 = vld [vmem:[%s13 + $0x60] sm:$0xf]
        %v2779 = vld [vmem:[%s13 + $0x64] sm:$0xf]
        %v2780 = vld [vmem:[%s13 + $0x68] sm:$0xf]
        %v2781 = vld [vmem:[%s13 + $0x6c] sm:$0xf]
        %v2782 = vld [vmem:[%s13 + $0x70] sm:$0xf]
        %v2783 = vld [vmem:[%s13 + $0x74] sm:$0xf]
        %v2784 = vld [vmem:[%s13 + $0x78] sm:$0xf]
        %v2785 = vld [vmem:[%s13 + $0x7c] sm:$0xf]
        %v2786 = vld [vmem:[%s14] sm:$0x1]
        %v2788 = vperm.slane %v2786, 0
        %v2822 = vunpack.c.l.b16 %v2754
        %v2823 = vunpack.c.l.b16 %v2755
        %v2824 = vunpack.c.l.b16 %v2756
        %v2825 = vunpack.c.l.b16 %v2757
        %v2826 = vunpack.c.l.b16 %v2758
        %v2827 = vunpack.c.l.b16 %v2759
        %v2828 = vunpack.c.l.b16 %v2760
        %v2829 = vunpack.c.l.b16 %v2761
        %v2830 = vunpack.c.l.b16 %v2762
        %v2831 = vunpack.c.l.b16 %v2763
        %v2832 = vunpack.c.l.b16 %v2764
        %v2833 = vunpack.c.l.b16 %v2765
        %v2834 = vunpack.c.l.b16 %v2766
        %v2835 = vunpack.c.l.b16 %v2767
        %v2836 = vunpack.c.l.b16 %v2768
        %v2837 = vunpack.c.l.b16 %v2769
        %v2838 = vunpack.c.l.b16 %v2770
        %v2839 = vunpack.c.l.b16 %v2771
        %v2840 = vunpack.c.l.b16 %v2772
        %v2841 = vunpack.c.l.b16 %v2773
        %v2842 = vunpack.c.l.b16 %v2774
        %v2843 = vunpack.c.l.b16 %v2775
        %v2844 = vunpack.c.l.b16 %v2776
        %v2845 = vunpack.c.l.b16 %v2777
        %v2846 = vunpack.c.l.b16 %v2778
        %v2847 = vunpack.c.l.b16 %v2779
        %v2848 = vunpack.c.l.b16 %v2780
        %v2849 = vunpack.c.l.b16 %v2781
        %v2850 = vunpack.c.l.b16 %v2782
        %v2851 = vunpack.c.l.b16 %v2783
        %v2852 = vunpack.c.l.b16 %v2784
        %v2853 = vunpack.c.l.b16 %v2785
        %v2854 = vpack.c.b16 %v2823, %v2822
        %v2855 = vpack.c.b16 %v2825, %v2824
        %v2856 = vpack.c.b16 %v2827, %v2826
        %v2857 = vpack.c.b16 %v2829, %v2828
        %v2858 = vpack.c.b16 %v2831, %v2830
        %v2859 = vpack.c.b16 %v2833, %v2832
        %v2860 = vpack.c.b16 %v2835, %v2834
        %v2861 = vpack.c.b16 %v2837, %v2836
        %v2862 = vpack.c.b16 %v2839, %v2838
        %v2863 = vpack.c.b16 %v2841, %v2840
        %v2864 = vpack.c.b16 %v2843, %v2842
        %v2865 = vpack.c.b16 %v2845, %v2844
        %v2866 = vpack.c.b16 %v2847, %v2846
        %v2867 = vpack.c.b16 %v2849, %v2848
        %v2868 = vpack.c.b16 %v2851, %v2850
        %v2869 = vpack.c.b16 %v2853, %v2852
        %2886 = vmatpush.bf16.msra.mxu0 %v2861
        %2887 = vmatpush.bf16.msra.mxu0 %v2860
        %2888 = vmatpush.bf16.msra.mxu0 %v2859
        %2889 = vmatpush.bf16.msra.mxu0 %v2858
        %2890 = vmatpush.bf16.msra.mxu0 %v2857
        %2891 = vmatpush.bf16.msra.mxu0 %v2856
        %2892 = vmatpush.bf16.msra.mxu0 %v2855
        %2893 = vmatpush.bf16.msra.mxu0 %v2854
        %2894 = vmatmul.bf16.gmra.mxu0 %v2738
        %v2895 = vpop.f32.mrf.mxu0
        %v2896 = vadd.f32 %v2788, %v2895
        %v2897 = vpop.f32.mrf.mxu0
        %v2898 = vadd.f32 %v2788, %v2897
        %2899 = vmatmul.bf16.gmra.mxu0 %v2740
        %v2900 = vpop.f32.mrf.mxu0
        %v2901 = vadd.f32 %v2788, %v2900
        %v2902 = vpop.f32.mrf.mxu0
        %v2903 = vadd.f32 %v2788, %v2902
        %2904 = vmatmul.bf16.gmra.mxu0 %v2742
        %v2905 = vpop.f32.mrf.mxu0
        %v2906 = vadd.f32 %v2788, %v2905
        %v2907 = vpop.f32.mrf.mxu0
        %v2908 = vadd.f32 %v2788, %v2907
        %2909 = vmatmul.bf16.gmra.mxu0 %v2744
        %v2910 = vpop.f32.mrf.mxu0
        %v2911 = vadd.f32 %v2788, %v2910
        %v2912 = vpop.f32.mrf.mxu0
        %v2913 = vadd.f32 %v2788, %v2912
        %2914 = vmatmul.bf16.gmra.mxu0 %v2746
        %v2915 = vpop.f32.mrf.mxu0
        %v2916 = vadd.f32 %v2788, %v2915
        %v2917 = vpop.f32.mrf.mxu0
        %v2918 = vadd.f32 %v2788, %v2917
        %2919 = vmatmul.bf16.gmra.mxu0 %v2748
        %v2920 = vpop.f32.mrf.mxu0
        %v2921 = vadd.f32 %v2788, %v2920
        %v2922 = vpop.f32.mrf.mxu0
        %v2923 = vadd.f32 %v2788, %v2922
        %2924 = vmatmul.bf16.gmra.mxu0 %v2750
        %v2925 = vpop.f32.mrf.mxu0
        %v2926 = vadd.f32 %v2788, %v2925
        %v2927 = vpop.f32.mrf.mxu0
        %v2928 = vadd.f32 %v2788, %v2927
        %2929 = vmatmul.bf16.gmra.mxu0 %v2752
        %v2930 = vpop.f32.mrf.mxu0
        %v2931 = vadd.f32 %v2788, %v2930
        %v2932 = vpop.f32.mrf.mxu0
        %v2933 = vadd.f32 %v2788, %v2932
        %2934 = vdwg.mxu0
        %2935 = vmatpush.bf16.msra.mxu0 %v2869
        %2936 = vmatpush.bf16.msra.mxu0 %v2868
        %2937 = vmatpush.bf16.msra.mxu0 %v2867
        %2938 = vmatpush.bf16.msra.mxu0 %v2866
        %2939 = vmatpush.bf16.msra.mxu0 %v2865
        %2940 = vmatpush.bf16.msra.mxu0 %v2864
        %2941 = vmatpush.bf16.msra.mxu0 %v2863
        %2942 = vmatpush.bf16.msra.mxu0 %v2862
        %2943 = vmatmul.bf16.gmra.mxu0 %v2739
        %v2944 = vpop.f32.mrf.mxu0
        %v2945 = vadd.f32 %v2896, %v2944
        %v2946 = vpop.f32.mrf.mxu0
        %v2947 = vadd.f32 %v2898, %v2946
        %2948 = vmatmul.bf16.gmra.mxu0 %v2741
        %v2949 = vpop.f32.mrf.mxu0
        %v2950 = vadd.f32 %v2901, %v2949
        %v2951 = vpop.f32.mrf.mxu0
        %v2952 = vadd.f32 %v2903, %v2951
        %2953 = vmatmul.bf16.gmra.mxu0 %v2743
        %v2954 = vpop.f32.mrf.mxu0
        %v2955 = vadd.f32 %v2906, %v2954
        %v2956 = vpop.f32.mrf.mxu0
        %v2957 = vadd.f32 %v2908, %v2956
        %2958 = vmatmul.bf16.gmra.mxu0 %v2745
        %v2959 = vpop.f32.mrf.mxu0
        %v2960 = vadd.f32 %v2911, %v2959
        %v2961 = vpop.f32.mrf.mxu0
        %v2962 = vadd.f32 %v2913, %v2961
        %2963 = vmatmul.bf16.gmra.mxu0 %v2747
        %v2964 = vpop.f32.mrf.mxu0
        %v2965 = vadd.f32 %v2916, %v2964
        %v2966 = vpop.f32.mrf.mxu0
        %v2967 = vadd.f32 %v2918, %v2966
        %2968 = vmatmul.bf16.gmra.mxu0 %v2749
        %v2969 = vpop.f32.mrf.mxu0
        %v2970 = vadd.f32 %v2921, %v2969
        %v2971 = vpop.f32.mrf.mxu0
        %v2972 = vadd.f32 %v2923, %v2971
        %2973 = vmatmul.bf16.gmra.mxu0 %v2751
        %v2974 = vpop.f32.mrf.mxu0
        %v2975 = vadd.f32 %v2926, %v2974
        %v2976 = vpop.f32.mrf.mxu0
        %v2977 = vadd.f32 %v2928, %v2976
        %2978 = vmatmul.bf16.gmra.mxu0 %v2753
        %v2979 = vpop.f32.mrf.mxu0
        %v2980 = vadd.f32 %v2931, %v2979
        %v2981 = vpop.f32.mrf.mxu0
        %v2982 = vadd.f32 %v2933, %v2981
        %2983 = vdwg.mxu0
        %2984 = vst [vmem:[%s521] sm:$0xff] %v2945
        %2985 = vst [vmem:[%s521 + $0x8] sm:$0xff] %v2947
        %2986 = vst [vmem:[%s521 + $0x10] sm:$0xff] %v2950
        %2987 = vst [vmem:[%s521 + $0x18] sm:$0xff] %v2952
        %2988 = vst [vmem:[%s521 + $0x20] sm:$0xff] %v2955
        %2989 = vst [vmem:[%s521 + $0x28] sm:$0xff] %v2957
        %2990 = vst [vmem:[%s521 + $0x30] sm:$0xff] %v2960
        %2991 = vst [vmem:[%s521 + $0x38] sm:$0xff] %v2962
        %2992 = vst [vmem:[%s521 + $0x40] sm:$0xff] %v2965
        %2993 = vst [vmem:[%s521 + $0x48] sm:$0xff] %v2967
        %2994 = vst [vmem:[%s521 + $0x50] sm:$0xff] %v2970
        %2995 = vst [vmem:[%s521 + $0x58] sm:$0xff] %v2972
        %2996 = vst [vmem:[%s521 + $0x60] sm:$0xff] %v2975
        %2997 = vst [vmem:[%s521 + $0x68] sm:$0xff] %v2977
        %2998 = vst [vmem:[%s521 + $0x70] sm:$0xff] %v2980
        %2999 = vst [vmem:[%s521 + $0x78] sm:$0xff] %v2982
        %3000 = vst [vmem:[%s528] sm:$0xff] %v2406
        %3001 = vst [vmem:[%s528 + $0x8] sm:$0xff] %v2407
        %3002 = vst [vmem:[%s528 + $0x10] sm:$0xff] %v2408
        %3003 = vst [vmem:[%s528 + $0x18] sm:$0xff] %v2409
        %3004 = vst [vmem:[%s528 + $0x20] sm:$0xff] %v2410
        %3005 = vst [vmem:[%s528 + $0x28] sm:$0xff] %v2411
        %3006 = vst [vmem:[%s528 + $0x30] sm:$0xff] %v2412
        %3007 = vst [vmem:[%s528 + $0x38] sm:$0xff] %v2413
        %3008 = vst [vmem:[%s528 + $0x40] sm:$0xff] %v2414
        %3009 = vst [vmem:[%s528 + $0x48] sm:$0xff] %v2415
        %3010 = vst [vmem:[%s528 + $0x50] sm:$0xff] %v2416
        %3011 = vst [vmem:[%s528 + $0x58] sm:$0xff] %v2417
        %3012 = vst [vmem:[%s528 + $0x60] sm:$0xff] %v2418
        %3013 = vst [vmem:[%s528 + $0x68] sm:$0xff] %v2419
        %3014 = vst [vmem:[%s528 + $0x70] sm:$0xff] %v2420
        %3015 = vst [vmem:[%s528 + $0x78] sm:$0xff] %v2421
        %s3016 = sand.u32 %s362, 1
        %s3017 = scalar_lea.sflag [#allocation3], %s3016
        %s3018 = sand.u32 %s362, 1
        %s3019 = smul.addr %s3018, 128
        %s3020 = scalar_lea.vmem [#allocation2], %s3019
        %s3021 = sand.u32 %s388, 1
        %s3022 = scalar_lea.sflag [#allocation5], %s3021
        %s3023 = sand.u32 %s388, 1
        %s3024 = smul.addr %s3023, 128
        %s3025 = scalar_lea.vmem [#allocation4], %s3024
        // Predicated region
        $region81: #{tpu_custom_call.1} parent=79 // pred_check
          %p3026 = pneg %p372
        $region82: #{tpu_custom_call.1} parent=79 // pred_check_branch
          %3028 = sbr.rel (%p3026) target = $region84
        $region83: #{tpu_custom_call.1} parent=79 // pred_region
          %s3029 = smul.u32 16, %s34
          %3031 = vsyncadd %s3017, 0
          %s3032 = smul.addr %s3029, 8
          %s3033 = scalar_lea.hbm %s15, %s3032
          %s3034 = sshll.u32 %s3020, 4
          %s3035 = int_to_ptr.vmem [resolvable:$true] %s3034
          %s3036 = sshll.u32 %s3033, 4
          %s3037 = int_to_ptr.hbm [resolvable:$true] %s3036
          %3042 = dma.vmem_to_hbm [thread:$0]  %s3035, 2048, %s3037, %s3017, 128, 128, 8
        $region84: #{tpu_custom_call.1} parent=79 // pred_fallthru
          _
        // Predicated region
        $region85: #{tpu_custom_call.1} parent=79 // pred_check
          %p3043 = pneg %p398
        $region86: #{tpu_custom_call.1} parent=79 // pred_check_branch
          %3045 = sbr.rel (%p3043) target = $region88
        $region87: #{tpu_custom_call.1} parent=79 // pred_region
          %s3046 = smul.u32 16, %s34
          %3048 = vsyncadd %s3022, 0
          %s3049 = smul.addr %s3046, 8
          %s3050 = scalar_lea.hbm %s16, %s3049
          %s3051 = sshll.u32 %s3025, 4
          %s3052 = int_to_ptr.vmem [resolvable:$true] %s3051
          %s3053 = sshll.u32 %s3050, 4
          %s3054 = int_to_ptr.hbm [resolvable:$true] %s3053
          %3059 = dma.vmem_to_hbm [thread:$0]  %s3052, 2048, %s3054, %s3022, 128, 128, 8
        $region88: #{tpu_custom_call.1} parent=79 // pred_fallthru
          _
      $region80: #{tpu_custom_call.1} parent=5 // pred_fallthru
        _
      %p3060 = scmp.le.s32.totalorder 2, %s29
      // Predicated region
      $region89: #{tpu_custom_call.1} parent=5 // pred_check
        %p3061 = pneg %p3060
      $region90: #{tpu_custom_call.1} parent=5 // pred_check_branch
        %3063 = sbr.rel (%p3061) target = $region92
      $region91: #{tpu_custom_call.1} parent=5 // pred_region
        %s3064 = ssub.s32 %s29, 2
        // Predicated region
        $region93: #{tpu_custom_call.1} parent=91 // pred_check
          %p3065 = pneg %p378
        $region94: #{tpu_custom_call.1} parent=91 // pred_check_branch
          %3067 = sbr.rel (%p3065) target = $region96
        $region95: #{tpu_custom_call.1} parent=91 // pred_region
          %s3068 = sand.u32 %s363, 1
          %s3069 = scalar_lea.sflag [#allocation3], %s3068
          %s3070 = sand.u32 %s363, 1
          %s3071 = smul.addr %s3070, 128
          %s3072 = scalar_lea.vmem [#allocation2], %s3071
          %3074 = dma.done %s3069, 2048
        $region96: #{tpu_custom_call.1} parent=91 // pred_fallthru
          _
        // Predicated region
        $region97: #{tpu_custom_call.1} parent=91 // pred_check
          %p3075 = pneg %p404
        $region98: #{tpu_custom_call.1} parent=91 // pred_check_branch
          %3077 = sbr.rel (%p3075) target = $region100
        $region99: #{tpu_custom_call.1} parent=91 // pred_region
          %s3078 = sand.u32 %s389, 1
          %s3079 = scalar_lea.sflag [#allocation5], %s3078
          %s3080 = sand.u32 %s389, 1
          %s3081 = smul.addr %s3080, 128
          %s3082 = scalar_lea.vmem [#allocation4], %s3081
          %3084 = dma.done %s3079, 2048
        $region100: #{tpu_custom_call.1} parent=91 // pred_fallthru
          _
      $region92: #{tpu_custom_call.1} parent=5 // pred_fallthru
        _
    $region6: #{tpu_custom_call.1} parent=1 // loop_footer
      %s33 = sadd.s32 1, %s29
    $region7: #{tpu_custom_call.1} parent=1 // loop_footer_branch
      %28 = sbr.rel target = $region3
    $region8: #{tpu_custom_call.1} parent=1 // loop_exit
      _
    %3085 = vsyncpa [#allocation3], 1
    %s3086 = scalar_lea.sflag [#allocation3], 1
    %3087 = vsyncpa %s3086, 1
    %3088 = vsyncpa [#allocation5], 1
    %s3089 = scalar_lea.sflag [#allocation5], 1
    %3090 = vsyncpa %s3089, 1

</llo_original>
